<compile_context>
chip_gen: v5e
topology: v5e:2x2
jax: 0.10.0
libtpu: 0.0.40
codegen_flags: <defaults>
</compile_context>

<pallas_src>
import math

import jax
import jax.numpy as jnp
from jax.experimental import pallas as pl
from jax.experimental.pallas import tpu as pltpu

FEAT = 256            # noisy_feat / cond_feat / output channel dim
TIME_DIM = 256        # sinusoidal timestep-embedding dim
HALF = TIME_DIM // 2  # 128 (cos half / sin half)
FUSE_HIDDEN = 512     # fusion first hidden dim (256 * 2)
MAX_PERIOD = 10000.0
NEG_SLOPE = 0.01      # PyTorch nn.LeakyReLU default negative_slope


def _leaky(x):
    return jnp.where(x >= 0.0, x, NEG_SLOPE * x)


def _round_up(x, m):
    return (x + m - 1) // m * m


def _pick_tile(B):
    """Pick (TB, B_pad) for the batch dimension.

    Small B: one grid step, rows rounded to a multiple of 16 (bf16 sublane
    packing). Large B: up to 512 rows per step to amortize per-step overhead,
    while keeping >= 2 grid steps (v7x megacore sharding of the parallel axis).
    """
    if B <= 128:
        tb = _round_up(max(B, 16), 16)
        return tb, tb
    n = _round_up(B, 128) // 128          # number of 128-row tiles
    tiles = 1
    for t in range(1, 5):                 # TB candidates: 128, 256, 384, 512
        if n % t == 0 and n // t >= 2:
            tiles = t
    return 128 * tiles, n * 128


# ------------------------------ Pallas kernel ------------------------------
def diffusion_kernel(noisy_ref, cond_ref, emb_ref,
                     w1_ref, b1_ref, w23_ref, b23_ref, w4_ref, b4_ref,
                     wf1n_ref, wf1c_ref, wf1t_ref, wf2_ref, wf3_ref,
                     out_ref):
    def mm(x_bf16, w_ref):
        # bf16 MXU operands, f32 accumulation.
        return jnp.dot(x_bf16, w_ref[...], preferred_element_type=jnp.float32)

    def mmf(x_f32, w_ref):
        return mm(x_f32.astype(jnp.bfloat16), w_ref)

    # ---- time_embedding MLP -------------------------------------------------
    # Linear#1 on the (already host-concatenated) cos|sin embedding:
    # a single K=256 matmul filling the 256-deep MXU on v6e/v7x.
    h = _leaky(mm(emb_ref[...], w1_ref) + b1_ref[...])
    # Linear#2 and Linear#3 (consecutive, no nonlinearity) folded at trace time.
    h = _leaky(mmf(h, w23_ref) + b23_ref[...])
    temb = mmf(h, w4_ref) + b4_ref[...]

    # ---- fusion MLP ----------------------------------------------------------
    # Linear(768->512, no bias) on concat([noisy, cond, temb]) via split weights.
    f = (mm(noisy_ref[...], wf1n_ref)
         + mm(cond_ref[...], wf1c_ref)
         + mmf(temb, wf1t_ref))
    f = _leaky(f)
    f = _leaky(mmf(f, wf2_ref))
    out_ref[...] = mmf(f, wf3_ref).astype(out_ref.dtype)


# ------------------------------ host wrapper -------------------------------
def diffusion_net_forward(params, noisy_feat, cond_feat, t):
    """Pallas forward of Diffusion_net.forward(noisy_feat, cond_feat, t)."""
    B = noisy_feat.shape[0]

    # Sinusoidal timestep embedding.
    # TODO(synk): sin/cos are evaluated outside the kernel (plain XLA ops) --
    # Mosaic's transcendental coverage (exp/tanh/rsqrt) does not portably
    # include sin/cos; all six Linear layers run inside the kernel.
    freqs = jnp.exp(-math.log(MAX_PERIOD)
                    * jnp.arange(HALF, dtype=jnp.float32) / HALF)
    args = t.astype(jnp.float32)[:, None] * freqs[None, :]          # (B, 128)
    emb = jnp.concatenate([jnp.cos(args), jnp.sin(args)], axis=-1)  # (B, 256)

    TB, B_pad = _pick_tile(B)

    def prep_rows(a):
        # Per-step row streams go to the kernel in bf16 (halves HBM->VMEM DMA).
        a = a.astype(jnp.bfloat16)
        if B_pad != B:
            a = jnp.pad(a, ((0, B_pad - B), (0, 0)))
        return a

    noisy = prep_rows(noisy_feat)
    cond = prep_rows(cond_feat)
    emb = prep_rows(emb)

    # Trace-time weight prep: bf16 MXU operands, concat-free split of wf1 and
    # the exact algebraic fold (in f32) of the two consecutive Linears (#2,#3).
    bf = lambda a: a.astype(jnp.bfloat16)
    w1 = bf(params["w1"])
    w23 = bf(params["w2"] @ params["w3"])
    b23 = params["b2"] @ params["w3"] + params["b3"]
    wf1 = params["wf1"]
    wf1n = bf(wf1[:FEAT])
    wf1c = bf(wf1[FEAT:2 * FEAT])
    wf1t = bf(wf1[2 * FEAT:])

    kernel_args = (noisy, cond, emb,
                   w1, params["b1"], w23, b23, bf(params["w4"]), params["b4"],
                   wf1n, wf1c, wf1t, bf(params["wf2"]), bf(params["wf3"]))

    def row_spec(cols):
        return pl.BlockSpec((TB, cols), lambda i: (i, 0))

    def resident_spec(a):
        return pl.BlockSpec(a.shape, lambda i: (0, 0))

    in_specs = ([row_spec(FEAT), row_spec(FEAT), row_spec(TIME_DIM)]
                + [resident_spec(a) for a in kernel_args[3:]])

    out = pl.pallas_call(
        diffusion_kernel,
        out_shape=jax.ShapeDtypeStruct((B_pad, FEAT), jnp.float32),
        grid_spec=pltpu.PrefetchScalarGridSpec(
            num_scalar_prefetch=0,
            grid=(B_pad // TB,),
            in_specs=in_specs,
            out_specs=row_spec(FEAT)),
        compiler_params=pltpu.CompilerParams(
            dimension_semantics=("parallel",)),
    )(*kernel_args)
    return out[:B]


# ------------------------------- parameters --------------------------------
def init_params(key):
    ks = iter(jax.random.split(key, 16))

    def lin_w(fan_in, shape):
        return (jax.random.normal(next(ks), shape, jnp.float32)
                / jnp.sqrt(float(fan_in)))

    def lin_b(shape):
        return 0.01 * jax.random.normal(next(ks), shape, jnp.float32)

    return dict(
        # time_embedding: Linear, LeakyReLU, Linear, Linear, LeakyReLU, Linear
        w1=lin_w(TIME_DIM, (TIME_DIM, FEAT)), b1=lin_b((1, FEAT)),
        w2=lin_w(FEAT, (FEAT, FEAT)), b2=lin_b((1, FEAT)),
        w3=lin_w(FEAT, (FEAT, FEAT)), b3=lin_b((1, FEAT)),
        w4=lin_w(FEAT, (FEAT, FEAT)), b4=lin_b((1, FEAT)),
        # fusion: Linear(768,512,F), LeakyReLU, Linear(512,256,F), LeakyReLU,
        #         Linear(256,256,F)
        wf1=lin_w(3 * FEAT, (3 * FEAT, FUSE_HIDDEN)),
        wf2=lin_w(FUSE_HIDDEN, (FUSE_HIDDEN, FEAT)),
        wf3=lin_w(FEAT, (FEAT, FEAT)),
    )


def reference_forward(params, noisy_feat, cond_feat, t):
    """Pure-JAX f32 reference mirroring the PyTorch module layer-by-layer."""
    freqs = jnp.exp(-math.log(MAX_PERIOD)
                    * jnp.arange(HALF, dtype=jnp.float32) / HALF)
    args = t.astype(jnp.float32)[:, None] * freqs[None, :]
    emb = jnp.concatenate([jnp.cos(args), jnp.sin(args)], axis=-1)
    h = _leaky(emb @ params["w1"] + params["b1"])
    h = h @ params["w2"] + params["b2"]
    h = _leaky(h @ params["w3"] + params["b3"])
    temb = h @ params["w4"] + params["b4"]
    f = _leaky(jnp.concatenate([noisy_feat, cond_feat, temb], -1) @ params["wf1"])
    f = _leaky(f @ params["wf2"])
    return f @ params["wf3"]


# --------------------------------- driver ----------------------------------
if __name__ == "__main__":
    key = jax.random.PRNGKey(0)
    k_p, k_n, k_c, k_t = jax.random.split(key, 4)
    params = init_params(k_p)

    B = 2
    noisy_feat = jax.random.normal(k_n, (B, FEAT), jnp.float32)
    cond_feat = jax.random.normal(k_c, (B, FEAT), jnp.float32)
    t = jax.random.uniform(k_t, (B,), jnp.float32, minval=0.0, maxval=1000.0)

    out = jax.jit(diffusion_net_forward)(params, noisy_feat, cond_feat, t)
    jax.block_until_ready(out)

    ref = reference_forward(params, noisy_feat, cond_feat, t)
    assert out.shape == (B, FEAT)
    assert bool(jnp.all(jnp.isfinite(out)))
    max_err = float(jnp.max(jnp.abs(out - ref)))
    assert max_err < 1e-1, f"kernel vs f32 reference max |err| = {max_err}"
    print("KERNEL_OK")
</pallas_src>

<mosaic_0001>
module attributes {stable_mosaic.version = 11 : i64} {
  func.func @diffusion_kernel(%arg0: i32, %arg1: memref<16x256xbf16, #tpu.memory_space<vmem>>, %arg2: memref<16x256xbf16, #tpu.memory_space<vmem>>, %arg3: memref<16x256xbf16, #tpu.memory_space<vmem>>, %arg4: memref<256x256xbf16, #tpu.memory_space<vmem>>, %arg5: memref<1x256xf32, #tpu.memory_space<vmem>>, %arg6: memref<256x256xbf16, #tpu.memory_space<vmem>>, %arg7: memref<1x256xf32, #tpu.memory_space<vmem>>, %arg8: memref<256x256xbf16, #tpu.memory_space<vmem>>, %arg9: memref<1x256xf32, #tpu.memory_space<vmem>>, %arg10: memref<256x512xbf16, #tpu.memory_space<vmem>>, %arg11: memref<256x512xbf16, #tpu.memory_space<vmem>>, %arg12: memref<256x512xbf16, #tpu.memory_space<vmem>>, %arg13: memref<512x256xbf16, #tpu.memory_space<vmem>>, %arg14: memref<256x256xbf16, #tpu.memory_space<vmem>>, %arg15: memref<16x256xf32, #tpu.memory_space<vmem>>) attributes {dimension_semantics = [#tpu.dimension_semantics<parallel>], iteration_bounds = array<i64: 1>, scalar_prefetch = 0 : i64, scratch_operands = 0 : i64, tpu.core_type = #tpu.core_type<tc>, window_params = [{transform_indices = @transform_0, window_bounds = array<i64: 16, 256>}, {transform_indices = @transform_1, window_bounds = array<i64: 16, 256>}, {transform_indices = @transform_2, window_bounds = array<i64: 16, 256>}, {pipeline_mode = #tpu.pipeline_mode<synchronous>, transform_indices = @transform_3, window_bounds = array<i64: 256, 256>}, {pipeline_mode = #tpu.pipeline_mode<synchronous>, transform_indices = @transform_4, window_bounds = array<i64: 1, 256>}, {pipeline_mode = #tpu.pipeline_mode<synchronous>, transform_indices = @transform_5, window_bounds = array<i64: 256, 256>}, {pipeline_mode = #tpu.pipeline_mode<synchronous>, transform_indices = @transform_6, window_bounds = array<i64: 1, 256>}, {pipeline_mode = #tpu.pipeline_mode<synchronous>, transform_indices = @transform_7, window_bounds = array<i64: 256, 256>}, {pipeline_mode = #tpu.pipeline_mode<synchronous>, transform_indices = @transform_8, window_bounds = array<i64: 1, 256>}, {pipeline_mode = #tpu.pipeline_mode<synchronous>, transform_indices = @transform_9, window_bounds = array<i64: 256, 512>}, {pipeline_mode = #tpu.pipeline_mode<synchronous>, transform_indices = @transform_10, window_bounds = array<i64: 256, 512>}, {pipeline_mode = #tpu.pipeline_mode<synchronous>, transform_indices = @transform_11, window_bounds = array<i64: 256, 512>}, {pipeline_mode = #tpu.pipeline_mode<synchronous>, transform_indices = @transform_12, window_bounds = array<i64: 512, 256>}, {pipeline_mode = #tpu.pipeline_mode<synchronous>, transform_indices = @transform_13, window_bounds = array<i64: 256, 256>}, {transform_indices = @transform_14, window_bounds = array<i64: 16, 256>}]} {
    %c0 = arith.constant 0 : index
    %c0_0 = arith.constant 0 : index
    %0 = vector.load %arg3[%c0, %c0_0] : memref<16x256xbf16, #tpu.memory_space<vmem>>, vector<16x256xbf16>
    %c0_1 = arith.constant 0 : index
    %c0_2 = arith.constant 0 : index
    %1 = vector.load %arg4[%c0_1, %c0_2] : memref<256x256xbf16, #tpu.memory_space<vmem>>, vector<256x256xbf16>
    %cst = arith.constant dense<0.000000e+00> : vector<16x256xf32>
    %2 = tpu.matmul %0, %1, %cst {dimension_numbers = #tpu.dot_dimension_numbers<[1], [0], [0], [1], [0, 0, 1, 1], [], []>} : vector<16x256xbf16>, vector<256x256xbf16>, vector<16x256xf32> -> vector<16x256xf32>
    %c0_3 = arith.constant 0 : index
    %c0_4 = arith.constant 0 : index
    %3 = vector.load %arg5[%c0_3, %c0_4] : memref<1x256xf32, #tpu.memory_space<vmem>>, vector<1x256xf32>
    %4 = vector.broadcast %3 : vector<1x256xf32> to vector<16x256xf32>
    %5 = arith.addf %2, %4 : vector<16x256xf32>
    %cst_5 = arith.constant 0.000000e+00 : f32
    %6 = vector.broadcast %cst_5 : f32 to vector<16x256xf32>
    %7 = arith.cmpf oge, %5, %6 : vector<16x256xf32>
    %cst_6 = arith.constant 0.00999999977 : f32
    %8 = vector.broadcast %cst_6 : f32 to vector<16x256xf32>
    %9 = arith.mulf %8, %5 : vector<16x256xf32>
    %10 = arith.select %7, %5, %9 : vector<16x256xi1>, vector<16x256xf32>
    %11 = arith.truncf %10 : vector<16x256xf32> to vector<16x256xbf16>
    %c0_7 = arith.constant 0 : index
    %c0_8 = arith.constant 0 : index
    %12 = vector.load %arg6[%c0_7, %c0_8] : memref<256x256xbf16, #tpu.memory_space<vmem>>, vector<256x256xbf16>
    %cst_9 = arith.constant dense<0.000000e+00> : vector<16x256xf32>
    %13 = tpu.matmul %11, %12, %cst_9 {dimension_numbers = #tpu.dot_dimension_numbers<[1], [0], [0], [1], [0, 0, 1, 1], [], []>} : vector<16x256xbf16>, vector<256x256xbf16>, vector<16x256xf32> -> vector<16x256xf32>
    %c0_10 = arith.constant 0 : index
    %c0_11 = arith.constant 0 : index
    %14 = vector.load %arg7[%c0_10, %c0_11] : memref<1x256xf32, #tpu.memory_space<vmem>>, vector<1x256xf32>
    %15 = vector.broadcast %14 : vector<1x256xf32> to vector<16x256xf32>
    %16 = arith.addf %13, %15 : vector<16x256xf32>
    %cst_12 = arith.constant 0.000000e+00 : f32
    %17 = vector.broadcast %cst_12 : f32 to vector<16x256xf32>
    %18 = arith.cmpf oge, %16, %17 : vector<16x256xf32>
    %cst_13 = arith.constant 0.00999999977 : f32
    %19 = vector.broadcast %cst_13 : f32 to vector<16x256xf32>
    %20 = arith.mulf %19, %16 : vector<16x256xf32>
    %21 = arith.select %18, %16, %20 : vector<16x256xi1>, vector<16x256xf32>
    %22 = arith.truncf %21 : vector<16x256xf32> to vector<16x256xbf16>
    %c0_14 = arith.constant 0 : index
    %c0_15 = arith.constant 0 : index
    %23 = vector.load %arg8[%c0_14, %c0_15] : memref<256x256xbf16, #tpu.memory_space<vmem>>, vector<256x256xbf16>
    %cst_16 = arith.constant dense<0.000000e+00> : vector<16x256xf32>
    %24 = tpu.matmul %22, %23, %cst_16 {dimension_numbers = #tpu.dot_dimension_numbers<[1], [0], [0], [1], [0, 0, 1, 1], [], []>} : vector<16x256xbf16>, vector<256x256xbf16>, vector<16x256xf32> -> vector<16x256xf32>
    %c0_17 = arith.constant 0 : index
    %c0_18 = arith.constant 0 : index
    %25 = vector.load %arg9[%c0_17, %c0_18] : memref<1x256xf32, #tpu.memory_space<vmem>>, vector<1x256xf32>
    %26 = vector.broadcast %25 : vector<1x256xf32> to vector<16x256xf32>
    %27 = arith.addf %24, %26 : vector<16x256xf32>
    %c0_19 = arith.constant 0 : index
    %c0_20 = arith.constant 0 : index
    %28 = vector.load %arg1[%c0_19, %c0_20] : memref<16x256xbf16, #tpu.memory_space<vmem>>, vector<16x256xbf16>
    %c0_21 = arith.constant 0 : index
    %c0_22 = arith.constant 0 : index
    %29 = vector.load %arg10[%c0_21, %c0_22] : memref<256x512xbf16, #tpu.memory_space<vmem>>, vector<256x512xbf16>
    %cst_23 = arith.constant dense<0.000000e+00> : vector<16x512xf32>
    %30 = tpu.matmul %28, %29, %cst_23 {dimension_numbers = #tpu.dot_dimension_numbers<[1], [0], [0], [1], [0, 0, 1, 1], [], []>} : vector<16x256xbf16>, vector<256x512xbf16>, vector<16x512xf32> -> vector<16x512xf32>
    %c0_24 = arith.constant 0 : index
    %c0_25 = arith.constant 0 : index
    %31 = vector.load %arg2[%c0_24, %c0_25] : memref<16x256xbf16, #tpu.memory_space<vmem>>, vector<16x256xbf16>
    %c0_26 = arith.constant 0 : index
    %c0_27 = arith.constant 0 : index
    %32 = vector.load %arg11[%c0_26, %c0_27] : memref<256x512xbf16, #tpu.memory_space<vmem>>, vector<256x512xbf16>
    %cst_28 = arith.constant dense<0.000000e+00> : vector<16x512xf32>
    %33 = tpu.matmul %31, %32, %cst_28 {dimension_numbers = #tpu.dot_dimension_numbers<[1], [0], [0], [1], [0, 0, 1, 1], [], []>} : vector<16x256xbf16>, vector<256x512xbf16>, vector<16x512xf32> -> vector<16x512xf32>
    %34 = arith.addf %30, %33 : vector<16x512xf32>
    %35 = arith.truncf %27 : vector<16x256xf32> to vector<16x256xbf16>
    %c0_29 = arith.constant 0 : index
    %c0_30 = arith.constant 0 : index
    %36 = vector.load %arg12[%c0_29, %c0_30] : memref<256x512xbf16, #tpu.memory_space<vmem>>, vector<256x512xbf16>
    %cst_31 = arith.constant dense<0.000000e+00> : vector<16x512xf32>
    %37 = tpu.matmul %35, %36, %cst_31 {dimension_numbers = #tpu.dot_dimension_numbers<[1], [0], [0], [1], [0, 0, 1, 1], [], []>} : vector<16x256xbf16>, vector<256x512xbf16>, vector<16x512xf32> -> vector<16x512xf32>
    %38 = arith.addf %34, %37 : vector<16x512xf32>
    %cst_32 = arith.constant 0.000000e+00 : f32
    %39 = vector.broadcast %cst_32 : f32 to vector<16x512xf32>
    %40 = arith.cmpf oge, %38, %39 : vector<16x512xf32>
    %cst_33 = arith.constant 0.00999999977 : f32
    %41 = vector.broadcast %cst_33 : f32 to vector<16x512xf32>
    %42 = arith.mulf %41, %38 : vector<16x512xf32>
    %43 = arith.select %40, %38, %42 : vector<16x512xi1>, vector<16x512xf32>
    %44 = arith.truncf %43 : vector<16x512xf32> to vector<16x512xbf16>
    %c0_34 = arith.constant 0 : index
    %c0_35 = arith.constant 0 : index
    %45 = vector.load %arg13[%c0_34, %c0_35] : memref<512x256xbf16, #tpu.memory_space<vmem>>, vector<512x256xbf16>
    %cst_36 = arith.constant dense<0.000000e+00> : vector<16x256xf32>
    %46 = tpu.matmul %44, %45, %cst_36 {dimension_numbers = #tpu.dot_dimension_numbers<[1], [0], [0], [1], [0, 0, 1, 1], [], []>} : vector<16x512xbf16>, vector<512x256xbf16>, vector<16x256xf32> -> vector<16x256xf32>
    %cst_37 = arith.constant 0.000000e+00 : f32
    %47 = vector.broadcast %cst_37 : f32 to vector<16x256xf32>
    %48 = arith.cmpf oge, %46, %47 : vector<16x256xf32>
    %cst_38 = arith.constant 0.00999999977 : f32
    %49 = vector.broadcast %cst_38 : f32 to vector<16x256xf32>
    %50 = arith.mulf %49, %46 : vector<16x256xf32>
    %51 = arith.select %48, %46, %50 : vector<16x256xi1>, vector<16x256xf32>
    %52 = arith.truncf %51 : vector<16x256xf32> to vector<16x256xbf16>
    %c0_39 = arith.constant 0 : index
    %c0_40 = arith.constant 0 : index
    %53 = vector.load %arg14[%c0_39, %c0_40] : memref<256x256xbf16, #tpu.memory_space<vmem>>, vector<256x256xbf16>
    %cst_41 = arith.constant dense<0.000000e+00> : vector<16x256xf32>
    %54 = tpu.matmul %52, %53, %cst_41 {dimension_numbers = #tpu.dot_dimension_numbers<[1], [0], [0], [1], [0, 0, 1, 1], [], []>} : vector<16x256xbf16>, vector<256x256xbf16>, vector<16x256xf32> -> vector<16x256xf32>
    %c0_42 = arith.constant 0 : index
    %c0_43 = arith.constant 0 : index
    %55 = vector.load %arg15[%c0_42, %c0_43] : memref<16x256xf32, #tpu.memory_space<vmem>>, vector<16x256xf32>
    tpu.vector_store %arg15[%c0_42, %c0_43], %54 {strides = array<i32>} : memref<16x256xf32, #tpu.memory_space<vmem>>, vector<16x256xf32>,
    return
  }
  func.func @transform_0(%arg0: i32) -> (i32, i32) {
    %c0_i32 = arith.constant 0 : i32
    %c0_i32_0 = arith.constant 0 : i32
    return %arg0, %c0_i32 : i32, i32
  }
  func.func @transform_1(%arg0: i32) -> (i32, i32) {
    %c0_i32 = arith.constant 0 : i32
    %c0_i32_0 = arith.constant 0 : i32
    return %arg0, %c0_i32 : i32, i32
  }
  func.func @transform_2(%arg0: i32) -> (i32, i32) {
    %c0_i32 = arith.constant 0 : i32
    %c0_i32_0 = arith.constant 0 : i32
    return %arg0, %c0_i32 : i32, i32
  }
  func.func @transform_3(%arg0: i32) -> (i32, i32) {
    %c0_i32 = arith.constant 0 : i32
    %c0_i32_0 = arith.constant 0 : i32
    %c0_i32_1 = arith.constant 0 : i32
    return %c0_i32, %c0_i32_0 : i32, i32
  }
  func.func @transform_4(%arg0: i32) -> (i32, i32) {
    %c0_i32 = arith.constant 0 : i32
    %c0_i32_0 = arith.constant 0 : i32
    %c0_i32_1 = arith.constant 0 : i32
    return %c0_i32, %c0_i32_0 : i32, i32
  }
  func.func @transform_5(%arg0: i32) -> (i32, i32) {
    %c0_i32 = arith.constant 0 : i32
    %c0_i32_0 = arith.constant 0 : i32
    %c0_i32_1 = arith.constant 0 : i32
    return %c0_i32, %c0_i32_0 : i32, i32
  }
  func.func @transform_6(%arg0: i32) -> (i32, i32) {
    %c0_i32 = arith.constant 0 : i32
    %c0_i32_0 = arith.constant 0 : i32
    %c0_i32_1 = arith.constant 0 : i32
    return %c0_i32, %c0_i32_0 : i32, i32
  }
  func.func @transform_7(%arg0: i32) -> (i32, i32) {
    %c0_i32 = arith.constant 0 : i32
    %c0_i32_0 = arith.constant 0 : i32
    %c0_i32_1 = arith.constant 0 : i32
    return %c0_i32, %c0_i32_0 : i32, i32
  }
  func.func @transform_8(%arg0: i32) -> (i32, i32) {
    %c0_i32 = arith.constant 0 : i32
    %c0_i32_0 = arith.constant 0 : i32
    %c0_i32_1 = arith.constant 0 : i32
    return %c0_i32, %c0_i32_0 : i32, i32
  }
  func.func @transform_9(%arg0: i32) -> (i32, i32) {
    %c0_i32 = arith.constant 0 : i32
    %c0_i32_0 = arith.constant 0 : i32
    %c0_i32_1 = arith.constant 0 : i32
    return %c0_i32, %c0_i32_0 : i32, i32
  }
  func.func @transform_10(%arg0: i32) -> (i32, i32) {
    %c0_i32 = arith.constant 0 : i32
    %c0_i32_0 = arith.constant 0 : i32
    %c0_i32_1 = arith.constant 0 : i32
    return %c0_i32, %c0_i32_0 : i32, i32
  }
  func.func @transform_11(%arg0: i32) -> (i32, i32) {
    %c0_i32 = arith.constant 0 : i32
    %c0_i32_0 = arith.constant 0 : i32
    %c0_i32_1 = arith.constant 0 : i32
    return %c0_i32, %c0_i32_0 : i32, i32
  }
  func.func @transform_12(%arg0: i32) -> (i32, i32) {
    %c0_i32 = arith.constant 0 : i32
    %c0_i32_0 = arith.constant 0 : i32
    %c0_i32_1 = arith.constant 0 : i32
    return %c0_i32, %c0_i32_0 : i32, i32
  }
  func.func @transform_13(%arg0: i32) -> (i32, i32) {
    %c0_i32 = arith.constant 0 : i32
    %c0_i32_0 = arith.constant 0 : i32
    %c0_i32_1 = arith.constant 0 : i32
    return %c0_i32, %c0_i32_0 : i32, i32
  }
  func.func @transform_14(%arg0: i32) -> (i32, i32) {
    %c0_i32 = arith.constant 0 : i32
    %c0_i32_0 = arith.constant 0 : i32
    return %arg0, %c0_i32 : i32, i32
  }
}

</mosaic_0001>

<llo_original>
// kernel: diffusion_net_forward.1
$region0: #{diffusion_net_forward.1}
  #allocation0 [shape = 'u32[]', space=smem, size = 0x4, offset = 0x4, fixed_abs, tag = 'smem constant byte address 0x4 - core index']
  #allocation1 [shape = 'u32[72,128]{1,0:T(1,128)}', space=vmem, size = 0x9000, scoped, tag = 'internal scratch']
  %s0 = inlined_call_operand.vmem [shape: bf16[16,256], index: 0, kind: input, shape index: {}]
  %s1 = inlined_call_operand.vmem [shape: bf16[16,256], index: 1, kind: input, shape index: {}]
  %s2 = inlined_call_operand.vmem [shape: bf16[16,256], index: 2, kind: input, shape index: {}]
  %s3 = inlined_call_operand.vmem [shape: bf16[256,256], index: 3, kind: input, shape index: {}]
  %s4 = inlined_call_operand.vmem [shape: f32[1,256], index: 4, kind: input, shape index: {}]
  %s5 = inlined_call_operand.vmem [shape: bf16[256,256], index: 5, kind: input, shape index: {}]
  %s6 = inlined_call_operand.vmem [shape: f32[1,256], index: 6, kind: input, shape index: {}]
  %s7 = inlined_call_operand.vmem [shape: bf16[256,256], index: 7, kind: input, shape index: {}]
  %s8 = inlined_call_operand.vmem [shape: f32[1,256], index: 8, kind: input, shape index: {}]
  %s9 = inlined_call_operand.vmem [shape: bf16[256,512], index: 9, kind: input, shape index: {}]
  %s10 = inlined_call_operand.vmem [shape: bf16[256,512], index: 10, kind: input, shape index: {}]
  %s11 = inlined_call_operand.vmem [shape: bf16[256,512], index: 11, kind: input, shape index: {}]
  %s12 = inlined_call_operand.vmem [shape: bf16[512,256], index: 12, kind: input, shape index: {}]
  %s13 = inlined_call_operand.vmem [shape: bf16[256,256], index: 13, kind: input, shape index: {}]
  %s14 = inlined_call_operand.vmem [shape: f32[16,256], index: 14, kind: output, shape index: {}]
  %s15 = sld [smem:[#allocation0]]
  $region66: #{diffusion_net_forward.1} parent=0
    _
  %s17 = ssub.s32 1, %s15
  %s18 = scalar_select 0, %s17, %s15
  // Predicated region
  $region2: #{diffusion_net_forward.1} parent=0 // pred_check
    _
  $region3: #{diffusion_net_forward.1} parent=0 // pred_check_branch
    %20 = sbr.rel (0) target = $region5
  $region4: #{diffusion_net_forward.1} parent=0 // pred_region
    _
  $region5: #{diffusion_net_forward.1} parent=0 // pred_fallthru
    _
  // Predicated region
  $region6: #{diffusion_net_forward.1} parent=0 // pred_check
    _
  $region7: #{diffusion_net_forward.1} parent=0 // pred_check_branch
    %22 = sbr.rel (0) target = $region9
  $region8: #{diffusion_net_forward.1} parent=0 // pred_region
    _
  $region9: #{diffusion_net_forward.1} parent=0 // pred_fallthru
    _
  // Predicated region
  $region10: #{diffusion_net_forward.1} parent=0 // pred_check
    _
  $region11: #{diffusion_net_forward.1} parent=0 // pred_check_branch
    %24 = sbr.rel (0) target = $region13
  $region12: #{diffusion_net_forward.1} parent=0 // pred_region
    _
  $region13: #{diffusion_net_forward.1} parent=0 // pred_fallthru
    _
  // Predicated region
  $region14: #{diffusion_net_forward.1} parent=0 // pred_check
    _
  $region15: #{diffusion_net_forward.1} parent=0 // pred_check_branch
    %26 = sbr.rel (0) target = $region17
  $region16: #{diffusion_net_forward.1} parent=0 // pred_region
    _
  $region17: #{diffusion_net_forward.1} parent=0 // pred_fallthru
    _
  // Predicated region
  $region18: #{diffusion_net_forward.1} parent=0 // pred_check
    _
  $region19: #{diffusion_net_forward.1} parent=0 // pred_check_branch
    %28 = sbr.rel (0) target = $region21
  $region20: #{diffusion_net_forward.1} parent=0 // pred_region
    _
  $region21: #{diffusion_net_forward.1} parent=0 // pred_fallthru
    _
  // Predicated region
  $region22: #{diffusion_net_forward.1} parent=0 // pred_check
    _
  $region23: #{diffusion_net_forward.1} parent=0 // pred_check_branch
    %30 = sbr.rel (0) target = $region25
  $region24: #{diffusion_net_forward.1} parent=0 // pred_region
    _
  $region25: #{diffusion_net_forward.1} parent=0 // pred_fallthru
    _
  // Predicated region
  $region26: #{diffusion_net_forward.1} parent=0 // pred_check
    _
  $region27: #{diffusion_net_forward.1} parent=0 // pred_check_branch
    %32 = sbr.rel (0) target = $region29
  $region28: #{diffusion_net_forward.1} parent=0 // pred_region
    _
  $region29: #{diffusion_net_forward.1} parent=0 // pred_fallthru
    _
  // Predicated region
  $region30: #{diffusion_net_forward.1} parent=0 // pred_check
    _
  $region31: #{diffusion_net_forward.1} parent=0 // pred_check_branch
    %34 = sbr.rel (0) target = $region33
  $region32: #{diffusion_net_forward.1} parent=0 // pred_region
    _
  $region33: #{diffusion_net_forward.1} parent=0 // pred_fallthru
    _
  // Predicated region
  $region34: #{diffusion_net_forward.1} parent=0 // pred_check
    _
  $region35: #{diffusion_net_forward.1} parent=0 // pred_check_branch
    %36 = sbr.rel (0) target = $region37
  $region36: #{diffusion_net_forward.1} parent=0 // pred_region
    _
  $region37: #{diffusion_net_forward.1} parent=0 // pred_fallthru
    _
  // Predicated region
  $region38: #{diffusion_net_forward.1} parent=0 // pred_check
    _
  $region39: #{diffusion_net_forward.1} parent=0 // pred_check_branch
    %38 = sbr.rel (0) target = $region41
  $region40: #{diffusion_net_forward.1} parent=0 // pred_region
    _
  $region41: #{diffusion_net_forward.1} parent=0 // pred_fallthru
    _
  // Predicated region
  $region42: #{diffusion_net_forward.1} parent=0 // pred_check
    _
  $region43: #{diffusion_net_forward.1} parent=0 // pred_check_branch
    %40 = sbr.rel (0) target = $region45
  $region44: #{diffusion_net_forward.1} parent=0 // pred_region
    _
  $region45: #{diffusion_net_forward.1} parent=0 // pred_fallthru
    _
  // Predicated region
  $region46: #{diffusion_net_forward.1} parent=0 // pred_check
    _
  $region47: #{diffusion_net_forward.1} parent=0 // pred_check_branch
    %42 = sbr.rel (0) target = $region49
  $region48: #{diffusion_net_forward.1} parent=0 // pred_region
    _
  $region49: #{diffusion_net_forward.1} parent=0 // pred_fallthru
    _
  // Predicated region
  $region50: #{diffusion_net_forward.1} parent=0 // pred_check
    _
  $region51: #{diffusion_net_forward.1} parent=0 // pred_check_branch
    %44 = sbr.rel (0) target = $region53
  $region52: #{diffusion_net_forward.1} parent=0 // pred_region
    _
  $region53: #{diffusion_net_forward.1} parent=0 // pred_fallthru
    _
  // Predicated region
  $region54: #{diffusion_net_forward.1} parent=0 // pred_check
    _
  $region55: #{diffusion_net_forward.1} parent=0 // pred_check_branch
    %46 = sbr.rel (0) target = $region57
  $region56: #{diffusion_net_forward.1} parent=0 // pred_region
    _
  $region57: #{diffusion_net_forward.1} parent=0 // pred_fallthru
    _
  %v47 = vld [vmem:[%s2] sm:$0xff]
  %v48 = vld [vmem:[%s2 + $0x8] sm:$0xff]
  %v49 = vld [vmem:[%s3] sm:$0xff]
  %v50 = vld [vmem:[%s3 + $0x8] sm:$0xff]
  %v51 = vld [vmem:[%s3 + $0x10] sm:$0xff]
  %v52 = vld [vmem:[%s3 + $0x18] sm:$0xff]
  %v53 = vld [vmem:[%s3 + $0x20] sm:$0xff]
  %v54 = vld [vmem:[%s3 + $0x28] sm:$0xff]
  %v55 = vld [vmem:[%s3 + $0x30] sm:$0xff]
  %v56 = vld [vmem:[%s3 + $0x38] sm:$0xff]
  %v57 = vld [vmem:[%s3 + $0x40] sm:$0xff]
  %v58 = vld [vmem:[%s3 + $0x48] sm:$0xff]
  %v59 = vld [vmem:[%s3 + $0x50] sm:$0xff]
  %v60 = vld [vmem:[%s3 + $0x58] sm:$0xff]
  %v61 = vld [vmem:[%s3 + $0x60] sm:$0xff]
  %v62 = vld [vmem:[%s3 + $0x68] sm:$0xff]
  %v63 = vld [vmem:[%s3 + $0x70] sm:$0xff]
  %v64 = vld [vmem:[%s3 + $0x78] sm:$0xff]
  %v65 = vld [vmem:[%s3 + $0x80] sm:$0xff]
  %v66 = vld [vmem:[%s3 + $0x88] sm:$0xff]
  %v67 = vld [vmem:[%s3 + $0x90] sm:$0xff]
  %v68 = vld [vmem:[%s3 + $0x98] sm:$0xff]
  %v69 = vld [vmem:[%s3 + $0xa0] sm:$0xff]
  %v70 = vld [vmem:[%s3 + $0xa8] sm:$0xff]
  %v71 = vld [vmem:[%s3 + $0xb0] sm:$0xff]
  %v72 = vld [vmem:[%s3 + $0xb8] sm:$0xff]
  %v73 = vld [vmem:[%s3 + $0xc0] sm:$0xff]
  %v74 = vld [vmem:[%s3 + $0xc8] sm:$0xff]
  %v75 = vld [vmem:[%s3 + $0xd0] sm:$0xff]
  %v76 = vld [vmem:[%s3 + $0xd8] sm:$0xff]
  %v77 = vld [vmem:[%s3 + $0xe0] sm:$0xff]
  %v78 = vld [vmem:[%s3 + $0xe8] sm:$0xff]
  %v79 = vld [vmem:[%s3 + $0xf0] sm:$0xff]
  %v80 = vld [vmem:[%s3 + $0xf8] sm:$0xff]
  %v81 = vld [vmem:[%s4] sm:$0x3]
  %v83 = vperm.slane %v81, 0
  %v84 = vperm.slane %v81, 1
  %v89 = vunpack.c.l.b16 %v47
  %v90 = vunpack.c.h.b16 %v47
  %v91 = vunpack.c.l.b16 %v48
  %v92 = vunpack.c.h.b16 %v48
  %v93 = vpack.c.b16 %v91, %v89
  %v94 = vpack.c.b16 %v92, %v90
  %v129 = vunpack.c.l.b16 %v49
  %v130 = vunpack.c.h.b16 %v49
  %v131 = vunpack.c.l.b16 %v50
  %v132 = vunpack.c.h.b16 %v50
  %v133 = vunpack.c.l.b16 %v51
  %v134 = vunpack.c.h.b16 %v51
  %v135 = vunpack.c.l.b16 %v52
  %v136 = vunpack.c.h.b16 %v52
  %v137 = vunpack.c.l.b16 %v53
  %v138 = vunpack.c.h.b16 %v53
  %v139 = vunpack.c.l.b16 %v54
  %v140 = vunpack.c.h.b16 %v54
  %v141 = vunpack.c.l.b16 %v55
  %v142 = vunpack.c.h.b16 %v55
  %v143 = vunpack.c.l.b16 %v56
  %v144 = vunpack.c.h.b16 %v56
  %v145 = vunpack.c.l.b16 %v57
  %v146 = vunpack.c.h.b16 %v57
  %v147 = vunpack.c.l.b16 %v58
  %v148 = vunpack.c.h.b16 %v58
  %v149 = vunpack.c.l.b16 %v59
  %v150 = vunpack.c.h.b16 %v59
  %v151 = vunpack.c.l.b16 %v60
  %v152 = vunpack.c.h.b16 %v60
  %v153 = vunpack.c.l.b16 %v61
  %v154 = vunpack.c.h.b16 %v61
  %v155 = vunpack.c.l.b16 %v62
  %v156 = vunpack.c.h.b16 %v62
  %v157 = vunpack.c.l.b16 %v63
  %v158 = vunpack.c.h.b16 %v63
  %v159 = vunpack.c.l.b16 %v64
  %v160 = vunpack.c.h.b16 %v64
  %v161 = vunpack.c.l.b16 %v65
  %v162 = vunpack.c.h.b16 %v65
  %v163 = vunpack.c.l.b16 %v66
  %v164 = vunpack.c.h.b16 %v66
  %v165 = vunpack.c.l.b16 %v67
  %v166 = vunpack.c.h.b16 %v67
  %v167 = vunpack.c.l.b16 %v68
  %v168 = vunpack.c.h.b16 %v68
  %v169 = vunpack.c.l.b16 %v69
  %v170 = vunpack.c.h.b16 %v69
  %v171 = vunpack.c.l.b16 %v70
  %v172 = vunpack.c.h.b16 %v70
  %v173 = vunpack.c.l.b16 %v71
  %v174 = vunpack.c.h.b16 %v71
  %v175 = vunpack.c.l.b16 %v72
  %v176 = vunpack.c.h.b16 %v72
  %v177 = vunpack.c.l.b16 %v73
  %v178 = vunpack.c.h.b16 %v73
  %v179 = vunpack.c.l.b16 %v74
  %v180 = vunpack.c.h.b16 %v74
  %v181 = vunpack.c.l.b16 %v75
  %v182 = vunpack.c.h.b16 %v75
  %v183 = vunpack.c.l.b16 %v76
  %v184 = vunpack.c.h.b16 %v76
  %v185 = vunpack.c.l.b16 %v77
  %v186 = vunpack.c.h.b16 %v77
  %v187 = vunpack.c.l.b16 %v78
  %v188 = vunpack.c.h.b16 %v78
  %v189 = vunpack.c.l.b16 %v79
  %v190 = vunpack.c.h.b16 %v79
  %v191 = vunpack.c.l.b16 %v80
  %v192 = vunpack.c.h.b16 %v80
  %v193 = vpack.c.b16 %v131, %v129
  %v194 = vpack.c.b16 %v132, %v130
  %v195 = vpack.c.b16 %v135, %v133
  %v196 = vpack.c.b16 %v136, %v134
  %v197 = vpack.c.b16 %v139, %v137
  %v198 = vpack.c.b16 %v140, %v138
  %v199 = vpack.c.b16 %v143, %v141
  %v200 = vpack.c.b16 %v144, %v142
  %v201 = vpack.c.b16 %v147, %v145
  %v202 = vpack.c.b16 %v148, %v146
  %v203 = vpack.c.b16 %v151, %v149
  %v204 = vpack.c.b16 %v152, %v150
  %v205 = vpack.c.b16 %v155, %v153
  %v206 = vpack.c.b16 %v156, %v154
  %v207 = vpack.c.b16 %v159, %v157
  %v208 = vpack.c.b16 %v160, %v158
  %v209 = vpack.c.b16 %v163, %v161
  %v210 = vpack.c.b16 %v164, %v162
  %v211 = vpack.c.b16 %v167, %v165
  %v212 = vpack.c.b16 %v168, %v166
  %v213 = vpack.c.b16 %v171, %v169
  %v214 = vpack.c.b16 %v172, %v170
  %v215 = vpack.c.b16 %v175, %v173
  %v216 = vpack.c.b16 %v176, %v174
  %v217 = vpack.c.b16 %v179, %v177
  %v218 = vpack.c.b16 %v180, %v178
  %v219 = vpack.c.b16 %v183, %v181
  %v220 = vpack.c.b16 %v184, %v182
  %v221 = vpack.c.b16 %v187, %v185
  %v222 = vpack.c.b16 %v188, %v186
  %v223 = vpack.c.b16 %v191, %v189
  %v224 = vpack.c.b16 %v192, %v190
  %257 = vmatpush.bf16.msra.mxu0 %v207
  %258 = vmatpush.bf16.msra.mxu0 %v205
  %259 = vmatpush.bf16.msra.mxu0 %v203
  %260 = vmatpush.bf16.msra.mxu0 %v201
  %261 = vmatpush.bf16.msra.mxu0 %v199
  %262 = vmatpush.bf16.msra.mxu0 %v197
  %263 = vmatpush.bf16.msra.mxu0 %v195
  %264 = vmatpush.bf16.msra.mxu0 %v193
  %265 = vmatmul.bf16.gmra.mxu0 %v93
  %v266 = vpop.f32.mrf.mxu0
  %v267 = vadd.f32 %v83, %v266
  %v268 = vpop.f32.mrf.mxu0
  %v269 = vadd.f32 %v83, %v268
  %270 = vdwg.mxu0
  %271 = vmatpush.bf16.msra.mxu0 %v223
  %272 = vmatpush.bf16.msra.mxu0 %v221
  %273 = vmatpush.bf16.msra.mxu0 %v219
  %274 = vmatpush.bf16.msra.mxu0 %v217
  %275 = vmatpush.bf16.msra.mxu0 %v215
  %276 = vmatpush.bf16.msra.mxu0 %v213
  %277 = vmatpush.bf16.msra.mxu0 %v211
  %278 = vmatpush.bf16.msra.mxu0 %v209
  %279 = vmatmul.bf16.gmra.mxu0 %v94
  %v280 = vpop.f32.mrf.mxu0
  %v281 = vadd.f32 %v267, %v280
  %v282 = vpop.f32.mrf.mxu0
  %v283 = vadd.f32 %v269, %v282
  %284 = vdwg.mxu0
  %285 = vmatpush.bf16.msra.mxu0 %v208
  %286 = vmatpush.bf16.msra.mxu0 %v206
  %287 = vmatpush.bf16.msra.mxu0 %v204
  %288 = vmatpush.bf16.msra.mxu0 %v202
  %289 = vmatpush.bf16.msra.mxu0 %v200
  %290 = vmatpush.bf16.msra.mxu0 %v198
  %291 = vmatpush.bf16.msra.mxu0 %v196
  %292 = vmatpush.bf16.msra.mxu0 %v194
  %293 = vmatmul.bf16.gmra.mxu0 %v93
  %v294 = vpop.f32.mrf.mxu0
  %v295 = vadd.f32 %v84, %v294
  %v296 = vpop.f32.mrf.mxu0
  %v297 = vadd.f32 %v84, %v296
  %298 = vdwg.mxu0
  %299 = vmatpush.bf16.msra.mxu0 %v224
  %300 = vmatpush.bf16.msra.mxu0 %v222
  %301 = vmatpush.bf16.msra.mxu0 %v220
  %302 = vmatpush.bf16.msra.mxu0 %v218
  %303 = vmatpush.bf16.msra.mxu0 %v216
  %304 = vmatpush.bf16.msra.mxu0 %v214
  %305 = vmatpush.bf16.msra.mxu0 %v212
  %306 = vmatpush.bf16.msra.mxu0 %v210
  %307 = vmatmul.bf16.gmra.mxu0 %v94
  %v308 = vpop.f32.mrf.mxu0
  %v309 = vadd.f32 %v295, %v308
  %v310 = vpop.f32.mrf.mxu0
  %v311 = vadd.f32 %v297, %v310
  %312 = vdwg.mxu0
  %vm313 = vcmp.ge.f32.partialorder %v281, 0.0
  %vm314 = vcmp.ge.f32.partialorder %v309, 0.0
  %vm315 = vcmp.ge.f32.partialorder %v283, 0.0
  %vm316 = vcmp.ge.f32.partialorder %v311, 0.0
  %v317 = vmul.f32 %v281, 0.01
  %v318 = vmul.f32 %v309, 0.01
  %v319 = vmul.f32 %v283, 0.01
  %v320 = vmul.f32 %v311, 0.01
  %v321 = vsel %vm313, %v281, %v317
  %v322 = vsel %vm314, %v309, %v318
  %v323 = vsel %vm315, %v283, %v319
  %v324 = vsel %vm316, %v311, %v320
  %v325 = vpack.c.bf16 %v323, %v321
  %v326 = vpack.c.bf16 %v324, %v322
  %v327 = vld [vmem:[%s5] sm:$0xff]
  %v328 = vld [vmem:[%s5 + $0x8] sm:$0xff]
  %v329 = vld [vmem:[%s5 + $0x10] sm:$0xff]
  %v330 = vld [vmem:[%s5 + $0x18] sm:$0xff]
  %v331 = vld [vmem:[%s5 + $0x20] sm:$0xff]
  %v332 = vld [vmem:[%s5 + $0x28] sm:$0xff]
  %v333 = vld [vmem:[%s5 + $0x30] sm:$0xff]
  %v334 = vld [vmem:[%s5 + $0x38] sm:$0xff]
  %v335 = vld [vmem:[%s5 + $0x40] sm:$0xff]
  %v336 = vld [vmem:[%s5 + $0x48] sm:$0xff]
  %v337 = vld [vmem:[%s5 + $0x50] sm:$0xff]
  %v338 = vld [vmem:[%s5 + $0x58] sm:$0xff]
  %v339 = vld [vmem:[%s5 + $0x60] sm:$0xff]
  %v340 = vld [vmem:[%s5 + $0x68] sm:$0xff]
  %v341 = vld [vmem:[%s5 + $0x70] sm:$0xff]
  %v342 = vld [vmem:[%s5 + $0x78] sm:$0xff]
  %v343 = vld [vmem:[%s5 + $0x80] sm:$0xff]
  %v344 = vld [vmem:[%s5 + $0x88] sm:$0xff]
  %v345 = vld [vmem:[%s5 + $0x90] sm:$0xff]
  %v346 = vld [vmem:[%s5 + $0x98] sm:$0xff]
  %v347 = vld [vmem:[%s5 + $0xa0] sm:$0xff]
  %v348 = vld [vmem:[%s5 + $0xa8] sm:$0xff]
  %v349 = vld [vmem:[%s5 + $0xb0] sm:$0xff]
  %v350 = vld [vmem:[%s5 + $0xb8] sm:$0xff]
  %v351 = vld [vmem:[%s5 + $0xc0] sm:$0xff]
  %v352 = vld [vmem:[%s5 + $0xc8] sm:$0xff]
  %v353 = vld [vmem:[%s5 + $0xd0] sm:$0xff]
  %v354 = vld [vmem:[%s5 + $0xd8] sm:$0xff]
  %v355 = vld [vmem:[%s5 + $0xe0] sm:$0xff]
  %v356 = vld [vmem:[%s5 + $0xe8] sm:$0xff]
  %v357 = vld [vmem:[%s5 + $0xf0] sm:$0xff]
  %v358 = vld [vmem:[%s5 + $0xf8] sm:$0xff]
  %v359 = vld [vmem:[%s6] sm:$0x3]
  %v361 = vperm.slane %v359, 0
  %v362 = vperm.slane %v359, 1
  %v397 = vunpack.c.l.b16 %v327
  %v398 = vunpack.c.h.b16 %v327
  %v399 = vunpack.c.l.b16 %v328
  %v400 = vunpack.c.h.b16 %v328
  %v401 = vunpack.c.l.b16 %v329
  %v402 = vunpack.c.h.b16 %v329
  %v403 = vunpack.c.l.b16 %v330
  %v404 = vunpack.c.h.b16 %v330
  %v405 = vunpack.c.l.b16 %v331
  %v406 = vunpack.c.h.b16 %v331
  %v407 = vunpack.c.l.b16 %v332
  %v408 = vunpack.c.h.b16 %v332
  %v409 = vunpack.c.l.b16 %v333
  %v410 = vunpack.c.h.b16 %v333
  %v411 = vunpack.c.l.b16 %v334
  %v412 = vunpack.c.h.b16 %v334
  %v413 = vunpack.c.l.b16 %v335
  %v414 = vunpack.c.h.b16 %v335
  %v415 = vunpack.c.l.b16 %v336
  %v416 = vunpack.c.h.b16 %v336
  %v417 = vunpack.c.l.b16 %v337
  %v418 = vunpack.c.h.b16 %v337
  %v419 = vunpack.c.l.b16 %v338
  %v420 = vunpack.c.h.b16 %v338
  %v421 = vunpack.c.l.b16 %v339
  %v422 = vunpack.c.h.b16 %v339
  %v423 = vunpack.c.l.b16 %v340
  %v424 = vunpack.c.h.b16 %v340
  %v425 = vunpack.c.l.b16 %v341
  %v426 = vunpack.c.h.b16 %v341
  %v427 = vunpack.c.l.b16 %v342
  %v428 = vunpack.c.h.b16 %v342
  %v429 = vunpack.c.l.b16 %v343
  %v430 = vunpack.c.h.b16 %v343
  %v431 = vunpack.c.l.b16 %v344
  %v432 = vunpack.c.h.b16 %v344
  %v433 = vunpack.c.l.b16 %v345
  %v434 = vunpack.c.h.b16 %v345
  %v435 = vunpack.c.l.b16 %v346
  %v436 = vunpack.c.h.b16 %v346
  %v437 = vunpack.c.l.b16 %v347
  %v438 = vunpack.c.h.b16 %v347
  %v439 = vunpack.c.l.b16 %v348
  %v440 = vunpack.c.h.b16 %v348
  %v441 = vunpack.c.l.b16 %v349
  %v442 = vunpack.c.h.b16 %v349
  %v443 = vunpack.c.l.b16 %v350
  %v444 = vunpack.c.h.b16 %v350
  %v445 = vunpack.c.l.b16 %v351
  %v446 = vunpack.c.h.b16 %v351
  %v447 = vunpack.c.l.b16 %v352
  %v448 = vunpack.c.h.b16 %v352
  %v449 = vunpack.c.l.b16 %v353
  %v450 = vunpack.c.h.b16 %v353
  %v451 = vunpack.c.l.b16 %v354
  %v452 = vunpack.c.h.b16 %v354
  %v453 = vunpack.c.l.b16 %v355
  %v454 = vunpack.c.h.b16 %v355
  %v455 = vunpack.c.l.b16 %v356
  %v456 = vunpack.c.h.b16 %v356
  %v457 = vunpack.c.l.b16 %v357
  %v458 = vunpack.c.h.b16 %v357
  %v459 = vunpack.c.l.b16 %v358
  %v460 = vunpack.c.h.b16 %v358
  %v461 = vpack.c.b16 %v399, %v397
  %v462 = vpack.c.b16 %v400, %v398
  %v463 = vpack.c.b16 %v403, %v401
  %v464 = vpack.c.b16 %v404, %v402
  %v465 = vpack.c.b16 %v407, %v405
  %v466 = vpack.c.b16 %v408, %v406
  %v467 = vpack.c.b16 %v411, %v409
  %v468 = vpack.c.b16 %v412, %v410
  %v469 = vpack.c.b16 %v415, %v413
  %v470 = vpack.c.b16 %v416, %v414
  %v471 = vpack.c.b16 %v419, %v417
  %v472 = vpack.c.b16 %v420, %v418
  %v473 = vpack.c.b16 %v423, %v421
  %v474 = vpack.c.b16 %v424, %v422
  %v475 = vpack.c.b16 %v427, %v425
  %v476 = vpack.c.b16 %v428, %v426
  %v477 = vpack.c.b16 %v431, %v429
  %v478 = vpack.c.b16 %v432, %v430
  %v479 = vpack.c.b16 %v435, %v433
  %v480 = vpack.c.b16 %v436, %v434
  %v481 = vpack.c.b16 %v439, %v437
  %v482 = vpack.c.b16 %v440, %v438
  %v483 = vpack.c.b16 %v443, %v441
  %v484 = vpack.c.b16 %v444, %v442
  %v485 = vpack.c.b16 %v447, %v445
  %v486 = vpack.c.b16 %v448, %v446
  %v487 = vpack.c.b16 %v451, %v449
  %v488 = vpack.c.b16 %v452, %v450
  %v489 = vpack.c.b16 %v455, %v453
  %v490 = vpack.c.b16 %v456, %v454
  %v491 = vpack.c.b16 %v459, %v457
  %v492 = vpack.c.b16 %v460, %v458
  %525 = vmatpush.bf16.msra.mxu0 %v475
  %526 = vmatpush.bf16.msra.mxu0 %v473
  %527 = vmatpush.bf16.msra.mxu0 %v471
  %528 = vmatpush.bf16.msra.mxu0 %v469
  %529 = vmatpush.bf16.msra.mxu0 %v467
  %530 = vmatpush.bf16.msra.mxu0 %v465
  %531 = vmatpush.bf16.msra.mxu0 %v463
  %532 = vmatpush.bf16.msra.mxu0 %v461
  %533 = vmatmul.bf16.gmra.mxu0 %v325
  %v534 = vpop.f32.mrf.mxu0
  %v535 = vadd.f32 %v361, %v534
  %v536 = vpop.f32.mrf.mxu0
  %v537 = vadd.f32 %v361, %v536
  %538 = vdwg.mxu0
  %539 = vmatpush.bf16.msra.mxu0 %v491
  %540 = vmatpush.bf16.msra.mxu0 %v489
  %541 = vmatpush.bf16.msra.mxu0 %v487
  %542 = vmatpush.bf16.msra.mxu0 %v485
  %543 = vmatpush.bf16.msra.mxu0 %v483
  %544 = vmatpush.bf16.msra.mxu0 %v481
  %545 = vmatpush.bf16.msra.mxu0 %v479
  %546 = vmatpush.bf16.msra.mxu0 %v477
  %547 = vmatmul.bf16.gmra.mxu0 %v326
  %v548 = vpop.f32.mrf.mxu0
  %v549 = vadd.f32 %v535, %v548
  %v550 = vpop.f32.mrf.mxu0
  %v551 = vadd.f32 %v537, %v550
  %552 = vdwg.mxu0
  %553 = vmatpush.bf16.msra.mxu0 %v476
  %554 = vmatpush.bf16.msra.mxu0 %v474
  %555 = vmatpush.bf16.msra.mxu0 %v472
  %556 = vmatpush.bf16.msra.mxu0 %v470
  %557 = vmatpush.bf16.msra.mxu0 %v468
  %558 = vmatpush.bf16.msra.mxu0 %v466
  %559 = vmatpush.bf16.msra.mxu0 %v464
  %560 = vmatpush.bf16.msra.mxu0 %v462
  %561 = vmatmul.bf16.gmra.mxu0 %v325
  %v562 = vpop.f32.mrf.mxu0
  %v563 = vadd.f32 %v362, %v562
  %v564 = vpop.f32.mrf.mxu0
  %v565 = vadd.f32 %v362, %v564
  %566 = vdwg.mxu0
  %567 = vmatpush.bf16.msra.mxu0 %v492
  %568 = vmatpush.bf16.msra.mxu0 %v490
  %569 = vmatpush.bf16.msra.mxu0 %v488
  %570 = vmatpush.bf16.msra.mxu0 %v486
  %571 = vmatpush.bf16.msra.mxu0 %v484
  %572 = vmatpush.bf16.msra.mxu0 %v482
  %573 = vmatpush.bf16.msra.mxu0 %v480
  %574 = vmatpush.bf16.msra.mxu0 %v478
  %575 = vmatmul.bf16.gmra.mxu0 %v326
  %v576 = vpop.f32.mrf.mxu0
  %v577 = vadd.f32 %v563, %v576
  %v578 = vpop.f32.mrf.mxu0
  %v579 = vadd.f32 %v565, %v578
  %580 = vdwg.mxu0
  %vm581 = vcmp.ge.f32.partialorder %v549, 0.0
  %vm582 = vcmp.ge.f32.partialorder %v577, 0.0
  %vm583 = vcmp.ge.f32.partialorder %v551, 0.0
  %vm584 = vcmp.ge.f32.partialorder %v579, 0.0
  %v585 = vmul.f32 %v549, 0.01
  %v586 = vmul.f32 %v577, 0.01
  %v587 = vmul.f32 %v551, 0.01
  %v588 = vmul.f32 %v579, 0.01
  %v589 = vsel %vm581, %v549, %v585
  %v590 = vsel %vm582, %v577, %v586
  %v591 = vsel %vm583, %v551, %v587
  %v592 = vsel %vm584, %v579, %v588
  %v593 = vpack.c.bf16 %v591, %v589
  %v594 = vpack.c.bf16 %v592, %v590
  %v595 = vld [vmem:[%s7] sm:$0xff]
  %v596 = vld [vmem:[%s7 + $0x8] sm:$0xff]
  %v597 = vld [vmem:[%s7 + $0x10] sm:$0xff]
  %v598 = vld [vmem:[%s7 + $0x18] sm:$0xff]
  %v599 = vld [vmem:[%s7 + $0x20] sm:$0xff]
  %v600 = vld [vmem:[%s7 + $0x28] sm:$0xff]
  %v601 = vld [vmem:[%s7 + $0x30] sm:$0xff]
  %v602 = vld [vmem:[%s7 + $0x38] sm:$0xff]
  %v603 = vld [vmem:[%s7 + $0x40] sm:$0xff]
  %v604 = vld [vmem:[%s7 + $0x48] sm:$0xff]
  %v605 = vld [vmem:[%s7 + $0x50] sm:$0xff]
  %v606 = vld [vmem:[%s7 + $0x58] sm:$0xff]
  %v607 = vld [vmem:[%s7 + $0x60] sm:$0xff]
  %v608 = vld [vmem:[%s7 + $0x68] sm:$0xff]
  %v609 = vld [vmem:[%s7 + $0x70] sm:$0xff]
  %v610 = vld [vmem:[%s7 + $0x78] sm:$0xff]
  %v611 = vld [vmem:[%s7 + $0x80] sm:$0xff]
  %v612 = vld [vmem:[%s7 + $0x88] sm:$0xff]
  %v613 = vld [vmem:[%s7 + $0x90] sm:$0xff]
  %v614 = vld [vmem:[%s7 + $0x98] sm:$0xff]
  %v615 = vld [vmem:[%s7 + $0xa0] sm:$0xff]
  %v616 = vld [vmem:[%s7 + $0xa8] sm:$0xff]
  %v617 = vld [vmem:[%s7 + $0xb0] sm:$0xff]
  %v618 = vld [vmem:[%s7 + $0xb8] sm:$0xff]
  %v619 = vld [vmem:[%s7 + $0xc0] sm:$0xff]
  %v620 = vld [vmem:[%s7 + $0xc8] sm:$0xff]
  %v621 = vld [vmem:[%s7 + $0xd0] sm:$0xff]
  %v622 = vld [vmem:[%s7 + $0xd8] sm:$0xff]
  %v623 = vld [vmem:[%s7 + $0xe0] sm:$0xff]
  %v624 = vld [vmem:[%s7 + $0xe8] sm:$0xff]
  %v625 = vld [vmem:[%s7 + $0xf0] sm:$0xff]
  %v626 = vld [vmem:[%s7 + $0xf8] sm:$0xff]
  %v627 = vld [vmem:[%s8] sm:$0x3]
  %v629 = vperm.slane %v627, 0
  %v630 = vperm.slane %v627, 1
  %v665 = vunpack.c.l.b16 %v595
  %v666 = vunpack.c.h.b16 %v595
  %v667 = vunpack.c.l.b16 %v596
  %v668 = vunpack.c.h.b16 %v596
  %v669 = vunpack.c.l.b16 %v597
  %v670 = vunpack.c.h.b16 %v597
  %v671 = vunpack.c.l.b16 %v598
  %v672 = vunpack.c.h.b16 %v598
  %v673 = vunpack.c.l.b16 %v599
  %v674 = vunpack.c.h.b16 %v599
  %v675 = vunpack.c.l.b16 %v600
  %v676 = vunpack.c.h.b16 %v600
  %v677 = vunpack.c.l.b16 %v601
  %v678 = vunpack.c.h.b16 %v601
  %v679 = vunpack.c.l.b16 %v602
  %v680 = vunpack.c.h.b16 %v602
  %v681 = vunpack.c.l.b16 %v603
  %v682 = vunpack.c.h.b16 %v603
  %v683 = vunpack.c.l.b16 %v604
  %v684 = vunpack.c.h.b16 %v604
  %v685 = vunpack.c.l.b16 %v605
  %v686 = vunpack.c.h.b16 %v605
  %v687 = vunpack.c.l.b16 %v606
  %v688 = vunpack.c.h.b16 %v606
  %v689 = vunpack.c.l.b16 %v607
  %v690 = vunpack.c.h.b16 %v607
  %v691 = vunpack.c.l.b16 %v608
  %v692 = vunpack.c.h.b16 %v608
  %v693 = vunpack.c.l.b16 %v609
  %v694 = vunpack.c.h.b16 %v609
  %v695 = vunpack.c.l.b16 %v610
  %v696 = vunpack.c.h.b16 %v610
  %v697 = vunpack.c.l.b16 %v611
  %v698 = vunpack.c.h.b16 %v611
  %v699 = vunpack.c.l.b16 %v612
  %v700 = vunpack.c.h.b16 %v612
  %v701 = vunpack.c.l.b16 %v613
  %v702 = vunpack.c.h.b16 %v613
  %v703 = vunpack.c.l.b16 %v614
  %v704 = vunpack.c.h.b16 %v614
  %v705 = vunpack.c.l.b16 %v615
  %v706 = vunpack.c.h.b16 %v615
  %v707 = vunpack.c.l.b16 %v616
  %v708 = vunpack.c.h.b16 %v616
  %v709 = vunpack.c.l.b16 %v617
  %v710 = vunpack.c.h.b16 %v617
  %v711 = vunpack.c.l.b16 %v618
  %v712 = vunpack.c.h.b16 %v618
  %v713 = vunpack.c.l.b16 %v619
  %v714 = vunpack.c.h.b16 %v619
  %v715 = vunpack.c.l.b16 %v620
  %v716 = vunpack.c.h.b16 %v620
  %v717 = vunpack.c.l.b16 %v621
  %v718 = vunpack.c.h.b16 %v621
  %v719 = vunpack.c.l.b16 %v622
  %v720 = vunpack.c.h.b16 %v622
  %v721 = vunpack.c.l.b16 %v623
  %v722 = vunpack.c.h.b16 %v623
  %v723 = vunpack.c.l.b16 %v624
  %v724 = vunpack.c.h.b16 %v624
  %v725 = vunpack.c.l.b16 %v625
  %v726 = vunpack.c.h.b16 %v625
  %v727 = vunpack.c.l.b16 %v626
  %v728 = vunpack.c.h.b16 %v626
  %v729 = vpack.c.b16 %v667, %v665
  %v730 = vpack.c.b16 %v668, %v666
  %v731 = vpack.c.b16 %v671, %v669
  %v732 = vpack.c.b16 %v672, %v670
  %v733 = vpack.c.b16 %v675, %v673
  %v734 = vpack.c.b16 %v676, %v674
  %v735 = vpack.c.b16 %v679, %v677
  %v736 = vpack.c.b16 %v680, %v678
  %v737 = vpack.c.b16 %v683, %v681
  %v738 = vpack.c.b16 %v684, %v682
  %v739 = vpack.c.b16 %v687, %v685
  %v740 = vpack.c.b16 %v688, %v686
  %v741 = vpack.c.b16 %v691, %v689
  %v742 = vpack.c.b16 %v692, %v690
  %v743 = vpack.c.b16 %v695, %v693
  %v744 = vpack.c.b16 %v696, %v694
  %v745 = vpack.c.b16 %v699, %v697
  %v746 = vpack.c.b16 %v700, %v698
  %v747 = vpack.c.b16 %v703, %v701
  %v748 = vpack.c.b16 %v704, %v702
  %v749 = vpack.c.b16 %v707, %v705
  %v750 = vpack.c.b16 %v708, %v706
  %v751 = vpack.c.b16 %v711, %v709
  %v752 = vpack.c.b16 %v712, %v710
  %v753 = vpack.c.b16 %v715, %v713
  %v754 = vpack.c.b16 %v716, %v714
  %v755 = vpack.c.b16 %v719, %v717
  %v756 = vpack.c.b16 %v720, %v718
  %v757 = vpack.c.b16 %v723, %v721
  %v758 = vpack.c.b16 %v724, %v722
  %v759 = vpack.c.b16 %v727, %v725
  %v760 = vpack.c.b16 %v728, %v726
  %793 = vmatpush.bf16.msra.mxu0 %v743
  %794 = vmatpush.bf16.msra.mxu0 %v741
  %795 = vmatpush.bf16.msra.mxu0 %v739
  %796 = vmatpush.bf16.msra.mxu0 %v737
  %797 = vmatpush.bf16.msra.mxu0 %v735
  %798 = vmatpush.bf16.msra.mxu0 %v733
  %799 = vmatpush.bf16.msra.mxu0 %v731
  %800 = vmatpush.bf16.msra.mxu0 %v729
  %801 = vmatmul.bf16.gmra.mxu0 %v593
  %v802 = vpop.f32.mrf.mxu0
  %v803 = vadd.f32 %v629, %v802
  %v804 = vpop.f32.mrf.mxu0
  %v805 = vadd.f32 %v629, %v804
  %806 = vdwg.mxu0
  %807 = vmatpush.bf16.msra.mxu0 %v759
  %808 = vmatpush.bf16.msra.mxu0 %v757
  %809 = vmatpush.bf16.msra.mxu0 %v755
  %810 = vmatpush.bf16.msra.mxu0 %v753
  %811 = vmatpush.bf16.msra.mxu0 %v751
  %812 = vmatpush.bf16.msra.mxu0 %v749
  %813 = vmatpush.bf16.msra.mxu0 %v747
  %814 = vmatpush.bf16.msra.mxu0 %v745
  %815 = vmatmul.bf16.gmra.mxu0 %v594
  %v816 = vpop.f32.mrf.mxu0
  %v817 = vadd.f32 %v803, %v816
  %v818 = vpop.f32.mrf.mxu0
  %v819 = vadd.f32 %v805, %v818
  %820 = vdwg.mxu0
  %821 = vmatpush.bf16.msra.mxu0 %v744
  %822 = vmatpush.bf16.msra.mxu0 %v742
  %823 = vmatpush.bf16.msra.mxu0 %v740
  %824 = vmatpush.bf16.msra.mxu0 %v738
  %825 = vmatpush.bf16.msra.mxu0 %v736
  %826 = vmatpush.bf16.msra.mxu0 %v734
  %827 = vmatpush.bf16.msra.mxu0 %v732
  %828 = vmatpush.bf16.msra.mxu0 %v730
  %829 = vmatmul.bf16.gmra.mxu0 %v593
  %v830 = vpop.f32.mrf.mxu0
  %v831 = vadd.f32 %v630, %v830
  %v832 = vpop.f32.mrf.mxu0
  %v833 = vadd.f32 %v630, %v832
  %834 = vdwg.mxu0
  %835 = vmatpush.bf16.msra.mxu0 %v760
  %836 = vmatpush.bf16.msra.mxu0 %v758
  %837 = vmatpush.bf16.msra.mxu0 %v756
  %838 = vmatpush.bf16.msra.mxu0 %v754
  %839 = vmatpush.bf16.msra.mxu0 %v752
  %840 = vmatpush.bf16.msra.mxu0 %v750
  %841 = vmatpush.bf16.msra.mxu0 %v748
  %842 = vmatpush.bf16.msra.mxu0 %v746
  %843 = vmatmul.bf16.gmra.mxu0 %v594
  %v844 = vpop.f32.mrf.mxu0
  %v845 = vadd.f32 %v831, %v844
  %v846 = vpop.f32.mrf.mxu0
  %v847 = vadd.f32 %v833, %v846
  %848 = vdwg.mxu0
  %v849 = vld [vmem:[%s0] sm:$0xff]
  %v850 = vld [vmem:[%s0 + $0x8] sm:$0xff]
  %v851 = vld [vmem:[%s9] sm:$0xff]
  %v852 = vld [vmem:[%s9 + $0x8] sm:$0xff]
  %v853 = vld [vmem:[%s9 + $0x10] sm:$0xff]
  %v854 = vld [vmem:[%s9 + $0x18] sm:$0xff]
  %v855 = vld [vmem:[%s9 + $0x20] sm:$0xff]
  %v856 = vld [vmem:[%s9 + $0x28] sm:$0xff]
  %v857 = vld [vmem:[%s9 + $0x30] sm:$0xff]
  %v858 = vld [vmem:[%s9 + $0x38] sm:$0xff]
  %v859 = vld [vmem:[%s9 + $0x40] sm:$0xff]
  %v860 = vld [vmem:[%s9 + $0x48] sm:$0xff]
  %v861 = vld [vmem:[%s9 + $0x50] sm:$0xff]
  %v862 = vld [vmem:[%s9 + $0x58] sm:$0xff]
  %v863 = vld [vmem:[%s9 + $0x60] sm:$0xff]
  %v864 = vld [vmem:[%s9 + $0x68] sm:$0xff]
  %v865 = vld [vmem:[%s9 + $0x70] sm:$0xff]
  %v866 = vld [vmem:[%s9 + $0x78] sm:$0xff]
  %v867 = vld [vmem:[%s9 + $0x80] sm:$0xff]
  %v868 = vld [vmem:[%s9 + $0x88] sm:$0xff]
  %v869 = vld [vmem:[%s9 + $0x90] sm:$0xff]
  %v870 = vld [vmem:[%s9 + $0x98] sm:$0xff]
  %v871 = vld [vmem:[%s9 + $0xa0] sm:$0xff]
  %v872 = vld [vmem:[%s9 + $0xa8] sm:$0xff]
  %v873 = vld [vmem:[%s9 + $0xb0] sm:$0xff]
  %v874 = vld [vmem:[%s9 + $0xb8] sm:$0xff]
  %v875 = vld [vmem:[%s9 + $0xc0] sm:$0xff]
  %v876 = vld [vmem:[%s9 + $0xc8] sm:$0xff]
  %v877 = vld [vmem:[%s9 + $0xd0] sm:$0xff]
  %v878 = vld [vmem:[%s9 + $0xd8] sm:$0xff]
  %v879 = vld [vmem:[%s9 + $0xe0] sm:$0xff]
  %v880 = vld [vmem:[%s9 + $0xe8] sm:$0xff]
  %v881 = vld [vmem:[%s9 + $0xf0] sm:$0xff]
  %v882 = vld [vmem:[%s9 + $0xf8] sm:$0xff]
  %v883 = vld [vmem:[%s9 + $0x100] sm:$0xff]
  %v884 = vld [vmem:[%s9 + $0x108] sm:$0xff]
  %v885 = vld [vmem:[%s9 + $0x110] sm:$0xff]
  %v886 = vld [vmem:[%s9 + $0x118] sm:$0xff]
  %v887 = vld [vmem:[%s9 + $0x120] sm:$0xff]
  %v888 = vld [vmem:[%s9 + $0x128] sm:$0xff]
  %v889 = vld [vmem:[%s9 + $0x130] sm:$0xff]
  %v890 = vld [vmem:[%s9 + $0x138] sm:$0xff]
  %v891 = vld [vmem:[%s9 + $0x140] sm:$0xff]
  %v892 = vld [vmem:[%s9 + $0x148] sm:$0xff]
  %v893 = vld [vmem:[%s9 + $0x150] sm:$0xff]
  %v894 = vld [vmem:[%s9 + $0x158] sm:$0xff]
  %v895 = vld [vmem:[%s9 + $0x160] sm:$0xff]
  %v896 = vld [vmem:[%s9 + $0x168] sm:$0xff]
  %v897 = vld [vmem:[%s9 + $0x170] sm:$0xff]
  %v898 = vld [vmem:[%s9 + $0x178] sm:$0xff]
  %v899 = vld [vmem:[%s9 + $0x180] sm:$0xff]
  %v900 = vld [vmem:[%s9 + $0x188] sm:$0xff]
  %v901 = vld [vmem:[%s9 + $0x190] sm:$0xff]
  %v902 = vld [vmem:[%s9 + $0x198] sm:$0xff]
  %v903 = vld [vmem:[%s9 + $0x1a0] sm:$0xff]
  %v904 = vld [vmem:[%s9 + $0x1a8] sm:$0xff]
  %v905 = vld [vmem:[%s9 + $0x1b0] sm:$0xff]
  %v906 = vld [vmem:[%s9 + $0x1b8] sm:$0xff]
  %v907 = vld [vmem:[%s9 + $0x1c0] sm:$0xff]
  %v908 = vld [vmem:[%s9 + $0x1c8] sm:$0xff]
  %v909 = vld [vmem:[%s9 + $0x1d0] sm:$0xff]
  %v910 = vld [vmem:[%s9 + $0x1d8] sm:$0xff]
  %v911 = vld [vmem:[%s9 + $0x1e0] sm:$0xff]
  %v912 = vld [vmem:[%s9 + $0x1e8] sm:$0xff]
  %v913 = vld [vmem:[%s9 + $0x1f0] sm:$0xff]
  %v914 = vld [vmem:[%s9 + $0x1f8] sm:$0xff]
  %v915 = vld [vmem:[%s1] sm:$0xff]
  %v916 = vld [vmem:[%s1 + $0x8] sm:$0xff]
  %v917 = vld [vmem:[%s10] sm:$0xff]
  %v918 = vld [vmem:[%s10 + $0x8] sm:$0xff]
  %v919 = vld [vmem:[%s10 + $0x10] sm:$0xff]
  %v920 = vld [vmem:[%s10 + $0x18] sm:$0xff]
  %v921 = vld [vmem:[%s10 + $0x20] sm:$0xff]
  %v922 = vld [vmem:[%s10 + $0x28] sm:$0xff]
  %v923 = vld [vmem:[%s10 + $0x30] sm:$0xff]
  %v924 = vld [vmem:[%s10 + $0x38] sm:$0xff]
  %v925 = vld [vmem:[%s10 + $0x40] sm:$0xff]
  %v926 = vld [vmem:[%s10 + $0x48] sm:$0xff]
  %v927 = vld [vmem:[%s10 + $0x50] sm:$0xff]
  %v928 = vld [vmem:[%s10 + $0x58] sm:$0xff]
  %v929 = vld [vmem:[%s10 + $0x60] sm:$0xff]
  %v930 = vld [vmem:[%s10 + $0x68] sm:$0xff]
  %v931 = vld [vmem:[%s10 + $0x70] sm:$0xff]
  %v932 = vld [vmem:[%s10 + $0x78] sm:$0xff]
  %v933 = vld [vmem:[%s10 + $0x80] sm:$0xff]
  %v934 = vld [vmem:[%s10 + $0x88] sm:$0xff]
  %v935 = vld [vmem:[%s10 + $0x90] sm:$0xff]
  %v936 = vld [vmem:[%s10 + $0x98] sm:$0xff]
  %v937 = vld [vmem:[%s10 + $0xa0] sm:$0xff]
  %v938 = vld [vmem:[%s10 + $0xa8] sm:$0xff]
  %v939 = vld [vmem:[%s10 + $0xb0] sm:$0xff]
  %v940 = vld [vmem:[%s10 + $0xb8] sm:$0xff]
  %v941 = vld [vmem:[%s10 + $0xc0] sm:$0xff]
  %v942 = vld [vmem:[%s10 + $0xc8] sm:$0xff]
  %v943 = vld [vmem:[%s10 + $0xd0] sm:$0xff]
  %v944 = vld [vmem:[%s10 + $0xd8] sm:$0xff]
  %v945 = vld [vmem:[%s10 + $0xe0] sm:$0xff]
  %v946 = vld [vmem:[%s10 + $0xe8] sm:$0xff]
  %v947 = vld [vmem:[%s10 + $0xf0] sm:$0xff]
  %v948 = vld [vmem:[%s10 + $0xf8] sm:$0xff]
  %v949 = vld [vmem:[%s10 + $0x100] sm:$0xff]
  %v950 = vld [vmem:[%s10 + $0x108] sm:$0xff]
  %v951 = vld [vmem:[%s10 + $0x110] sm:$0xff]
  %v952 = vld [vmem:[%s10 + $0x118] sm:$0xff]
  %v953 = vld [vmem:[%s10 + $0x120] sm:$0xff]
  %v954 = vld [vmem:[%s10 + $0x128] sm:$0xff]
  %v955 = vld [vmem:[%s10 + $0x130] sm:$0xff]
  %v956 = vld [vmem:[%s10 + $0x138] sm:$0xff]
  %v957 = vld [vmem:[%s10 + $0x140] sm:$0xff]
  %v958 = vld [vmem:[%s10 + $0x148] sm:$0xff]
  %v959 = vld [vmem:[%s10 + $0x150] sm:$0xff]
  %v960 = vld [vmem:[%s10 + $0x158] sm:$0xff]
  %v961 = vld [vmem:[%s10 + $0x160] sm:$0xff]
  %v962 = vld [vmem:[%s10 + $0x168] sm:$0xff]
  %v963 = vld [vmem:[%s10 + $0x170] sm:$0xff]
  %v964 = vld [vmem:[%s10 + $0x178] sm:$0xff]
  %v965 = vld [vmem:[%s10 + $0x180] sm:$0xff]
  %v966 = vld [vmem:[%s10 + $0x188] sm:$0xff]
  %v967 = vld [vmem:[%s10 + $0x190] sm:$0xff]
  %v968 = vld [vmem:[%s10 + $0x198] sm:$0xff]
  %v969 = vld [vmem:[%s10 + $0x1a0] sm:$0xff]
  %v970 = vld [vmem:[%s10 + $0x1a8] sm:$0xff]
  %v971 = vld [vmem:[%s10 + $0x1b0] sm:$0xff]
  %v972 = vld [vmem:[%s10 + $0x1b8] sm:$0xff]
  %v973 = vld [vmem:[%s10 + $0x1c0] sm:$0xff]
  %v974 = vld [vmem:[%s10 + $0x1c8] sm:$0xff]
  %v975 = vld [vmem:[%s10 + $0x1d0] sm:$0xff]
  %v976 = vld [vmem:[%s10 + $0x1d8] sm:$0xff]
  %v977 = vld [vmem:[%s10 + $0x1e0] sm:$0xff]
  %v978 = vld [vmem:[%s10 + $0x1e8] sm:$0xff]
  %v979 = vld [vmem:[%s10 + $0x1f0] sm:$0xff]
  %v980 = vld [vmem:[%s10 + $0x1f8] sm:$0xff]
  %v983 = vunpack.c.l.b16 %v915
  %v984 = vunpack.c.h.b16 %v915
  %v985 = vunpack.c.l.b16 %v916
  %v986 = vunpack.c.h.b16 %v916
  %v987 = vpack.c.b16 %v985, %v983
  %v988 = vpack.c.b16 %v986, %v984
  %v1055 = vunpack.c.l.b16 %v917
  %v1056 = vunpack.c.h.b16 %v917
  %v1057 = vunpack.c.l.b16 %v918
  %v1058 = vunpack.c.h.b16 %v918
  %v1059 = vunpack.c.l.b16 %v919
  %v1060 = vunpack.c.h.b16 %v919
  %v1061 = vunpack.c.l.b16 %v920
  %v1062 = vunpack.c.h.b16 %v920
  %v1063 = vunpack.c.l.b16 %v921
  %v1064 = vunpack.c.h.b16 %v921
  %v1065 = vunpack.c.l.b16 %v922
  %v1066 = vunpack.c.h.b16 %v922
  %v1067 = vunpack.c.l.b16 %v923
  %v1068 = vunpack.c.h.b16 %v923
  %v1069 = vunpack.c.l.b16 %v924
  %v1070 = vunpack.c.h.b16 %v924
  %v1071 = vunpack.c.l.b16 %v925
  %v1072 = vunpack.c.h.b16 %v925
  %v1073 = vunpack.c.l.b16 %v926
  %v1074 = vunpack.c.h.b16 %v926
  %v1075 = vunpack.c.l.b16 %v927
  %v1076 = vunpack.c.h.b16 %v927
  %v1077 = vunpack.c.l.b16 %v928
  %v1078 = vunpack.c.h.b16 %v928
  %v1079 = vunpack.c.l.b16 %v929
  %v1080 = vunpack.c.h.b16 %v929
  %v1081 = vunpack.c.l.b16 %v930
  %v1082 = vunpack.c.h.b16 %v930
  %v1083 = vunpack.c.l.b16 %v931
  %v1084 = vunpack.c.h.b16 %v931
  %v1085 = vunpack.c.l.b16 %v932
  %v1086 = vunpack.c.h.b16 %v932
  %v1087 = vunpack.c.l.b16 %v933
  %v1088 = vunpack.c.h.b16 %v933
  %v1089 = vunpack.c.l.b16 %v934
  %v1090 = vunpack.c.h.b16 %v934
  %v1091 = vunpack.c.l.b16 %v935
  %v1092 = vunpack.c.h.b16 %v935
  %v1093 = vunpack.c.l.b16 %v936
  %v1094 = vunpack.c.h.b16 %v936
  %v1095 = vunpack.c.l.b16 %v937
  %v1096 = vunpack.c.h.b16 %v937
  %v1097 = vunpack.c.l.b16 %v938
  %v1098 = vunpack.c.h.b16 %v938
  %v1099 = vunpack.c.l.b16 %v939
  %v1100 = vunpack.c.h.b16 %v939
  %v1101 = vunpack.c.l.b16 %v940
  %v1102 = vunpack.c.h.b16 %v940
  %v1103 = vunpack.c.l.b16 %v941
  %v1104 = vunpack.c.h.b16 %v941
  %v1105 = vunpack.c.l.b16 %v942
  %v1106 = vunpack.c.h.b16 %v942
  %v1107 = vunpack.c.l.b16 %v943
  %v1108 = vunpack.c.h.b16 %v943
  %v1109 = vunpack.c.l.b16 %v944
  %v1110 = vunpack.c.h.b16 %v944
  %v1111 = vunpack.c.l.b16 %v945
  %v1112 = vunpack.c.h.b16 %v945
  %v1113 = vunpack.c.l.b16 %v946
  %v1114 = vunpack.c.h.b16 %v946
  %v1115 = vunpack.c.l.b16 %v947
  %v1116 = vunpack.c.h.b16 %v947
  %v1117 = vunpack.c.l.b16 %v948
  %v1118 = vunpack.c.h.b16 %v948
  %v1119 = vunpack.c.l.b16 %v949
  %v1120 = vunpack.c.h.b16 %v949
  %v1121 = vunpack.c.l.b16 %v950
  %v1122 = vunpack.c.h.b16 %v950
  %v1123 = vunpack.c.l.b16 %v951
  %v1124 = vunpack.c.h.b16 %v951
  %v1125 = vunpack.c.l.b16 %v952
  %v1126 = vunpack.c.h.b16 %v952
  %v1127 = vunpack.c.l.b16 %v953
  %v1128 = vunpack.c.h.b16 %v953
  %v1129 = vunpack.c.l.b16 %v954
  %v1130 = vunpack.c.h.b16 %v954
  %v1131 = vunpack.c.l.b16 %v955
  %v1132 = vunpack.c.h.b16 %v955
  %v1133 = vunpack.c.l.b16 %v956
  %v1134 = vunpack.c.h.b16 %v956
  %v1135 = vunpack.c.l.b16 %v957
  %v1136 = vunpack.c.h.b16 %v957
  %v1137 = vunpack.c.l.b16 %v958
  %v1138 = vunpack.c.h.b16 %v958
  %v1139 = vunpack.c.l.b16 %v959
  %v1140 = vunpack.c.h.b16 %v959
  %v1141 = vunpack.c.l.b16 %v960
  %v1142 = vunpack.c.h.b16 %v960
  %v1143 = vunpack.c.l.b16 %v961
  %v1144 = vunpack.c.h.b16 %v961
  %v1145 = vunpack.c.l.b16 %v962
  %v1146 = vunpack.c.h.b16 %v962
  %v1147 = vunpack.c.l.b16 %v963
  %v1148 = vunpack.c.h.b16 %v963
  %v1149 = vunpack.c.l.b16 %v964
  %v1150 = vunpack.c.h.b16 %v964
  %v1151 = vunpack.c.l.b16 %v965
  %v1152 = vunpack.c.h.b16 %v965
  %v1153 = vunpack.c.l.b16 %v966
  %v1154 = vunpack.c.h.b16 %v966
  %v1155 = vunpack.c.l.b16 %v967
  %v1156 = vunpack.c.h.b16 %v967
  %v1157 = vunpack.c.l.b16 %v968
  %v1158 = vunpack.c.h.b16 %v968
  %v1159 = vunpack.c.l.b16 %v969
  %v1160 = vunpack.c.h.b16 %v969
  %v1161 = vunpack.c.l.b16 %v970
  %v1162 = vunpack.c.h.b16 %v970
  %v1163 = vunpack.c.l.b16 %v971
  %v1164 = vunpack.c.h.b16 %v971
  %v1165 = vunpack.c.l.b16 %v972
  %v1166 = vunpack.c.h.b16 %v972
  %v1167 = vunpack.c.l.b16 %v973
  %v1168 = vunpack.c.h.b16 %v973
  %v1169 = vunpack.c.l.b16 %v974
  %v1170 = vunpack.c.h.b16 %v974
  %v1171 = vunpack.c.l.b16 %v975
  %v1172 = vunpack.c.h.b16 %v975
  %v1173 = vunpack.c.l.b16 %v976
  %v1174 = vunpack.c.h.b16 %v976
  %v1175 = vunpack.c.l.b16 %v977
  %v1176 = vunpack.c.h.b16 %v977
  %v1177 = vunpack.c.l.b16 %v978
  %v1178 = vunpack.c.h.b16 %v978
  %v1179 = vunpack.c.l.b16 %v979
  %v1180 = vunpack.c.h.b16 %v979
  %v1181 = vunpack.c.l.b16 %v980
  %v1182 = vunpack.c.h.b16 %v980
  %v1183 = vpack.c.b16 %v1059, %v1055
  %v1184 = vpack.c.b16 %v1060, %v1056
  %v1185 = vpack.c.b16 %v1061, %v1057
  %v1186 = vpack.c.b16 %v1062, %v1058
  %v1187 = vpack.c.b16 %v1067, %v1063
  %v1188 = vpack.c.b16 %v1068, %v1064
  %v1189 = vpack.c.b16 %v1069, %v1065
  %v1190 = vpack.c.b16 %v1070, %v1066
  %v1191 = vpack.c.b16 %v1075, %v1071
  %v1192 = vpack.c.b16 %v1076, %v1072
  %v1193 = vpack.c.b16 %v1077, %v1073
  %v1194 = vpack.c.b16 %v1078, %v1074
  %v1195 = vpack.c.b16 %v1083, %v1079
  %v1196 = vpack.c.b16 %v1084, %v1080
  %v1197 = vpack.c.b16 %v1085, %v1081
  %v1198 = vpack.c.b16 %v1086, %v1082
  %v1199 = vpack.c.b16 %v1091, %v1087
  %v1200 = vpack.c.b16 %v1092, %v1088
  %v1201 = vpack.c.b16 %v1093, %v1089
  %v1202 = vpack.c.b16 %v1094, %v1090
  %v1203 = vpack.c.b16 %v1099, %v1095
  %v1204 = vpack.c.b16 %v1100, %v1096
  %v1205 = vpack.c.b16 %v1101, %v1097
  %v1206 = vpack.c.b16 %v1102, %v1098
  %v1207 = vpack.c.b16 %v1107, %v1103
  %v1208 = vpack.c.b16 %v1108, %v1104
  %v1209 = vpack.c.b16 %v1109, %v1105
  %v1210 = vpack.c.b16 %v1110, %v1106
  %v1211 = vpack.c.b16 %v1115, %v1111
  %v1212 = vpack.c.b16 %v1116, %v1112
  %v1213 = vpack.c.b16 %v1117, %v1113
  %v1214 = vpack.c.b16 %v1118, %v1114
  %v1215 = vpack.c.b16 %v1123, %v1119
  %v1216 = vpack.c.b16 %v1124, %v1120
  %v1217 = vpack.c.b16 %v1125, %v1121
  %v1218 = vpack.c.b16 %v1126, %v1122
  %v1219 = vpack.c.b16 %v1131, %v1127
  %v1220 = vpack.c.b16 %v1132, %v1128
  %v1221 = vpack.c.b16 %v1133, %v1129
  %v1222 = vpack.c.b16 %v1134, %v1130
  %v1223 = vpack.c.b16 %v1139, %v1135
  %v1224 = vpack.c.b16 %v1140, %v1136
  %v1225 = vpack.c.b16 %v1141, %v1137
  %v1226 = vpack.c.b16 %v1142, %v1138
  %v1227 = vpack.c.b16 %v1147, %v1143
  %v1228 = vpack.c.b16 %v1148, %v1144
  %v1229 = vpack.c.b16 %v1149, %v1145
  %v1230 = vpack.c.b16 %v1150, %v1146
  %v1231 = vpack.c.b16 %v1155, %v1151
  %v1232 = vpack.c.b16 %v1156, %v1152
  %v1233 = vpack.c.b16 %v1157, %v1153
  %v1234 = vpack.c.b16 %v1158, %v1154
  %v1235 = vpack.c.b16 %v1163, %v1159
  %v1236 = vpack.c.b16 %v1164, %v1160
  %v1237 = vpack.c.b16 %v1165, %v1161
  %v1238 = vpack.c.b16 %v1166, %v1162
  %v1239 = vpack.c.b16 %v1171, %v1167
  %v1240 = vpack.c.b16 %v1172, %v1168
  %v1241 = vpack.c.b16 %v1173, %v1169
  %v1242 = vpack.c.b16 %v1174, %v1170
  %v1243 = vpack.c.b16 %v1179, %v1175
  %v1244 = vpack.c.b16 %v1180, %v1176
  %v1245 = vpack.c.b16 %v1181, %v1177
  %v1246 = vpack.c.b16 %v1182, %v1178
  %1311 = vmatpush.bf16.msra.mxu0 %v1211
  %1312 = vmatpush.bf16.msra.mxu0 %v1207
  %1313 = vmatpush.bf16.msra.mxu0 %v1203
  %1314 = vmatpush.bf16.msra.mxu0 %v1199
  %1315 = vmatpush.bf16.msra.mxu0 %v1195
  %1316 = vmatpush.bf16.msra.mxu0 %v1191
  %1317 = vmatpush.bf16.msra.mxu0 %v1187
  %1318 = vmatpush.bf16.msra.mxu0 %v1183
  %1319 = vmatmul.bf16.gmra.mxu0 %v987
  %v1320 = vpop.f32.mrf.mxu0
  %v1321 = vadd.f32 0.0, %v1320
  %v1322 = vpop.f32.mrf.mxu0
  %v1323 = vadd.f32 0.0, %v1322
  %1324 = vdwg.mxu0
  %1325 = vmatpush.bf16.msra.mxu0 %v1243
  %1326 = vmatpush.bf16.msra.mxu0 %v1239
  %1327 = vmatpush.bf16.msra.mxu0 %v1235
  %1328 = vmatpush.bf16.msra.mxu0 %v1231
  %1329 = vmatpush.bf16.msra.mxu0 %v1227
  %1330 = vmatpush.bf16.msra.mxu0 %v1223
  %1331 = vmatpush.bf16.msra.mxu0 %v1219
  %1332 = vmatpush.bf16.msra.mxu0 %v1215
  %1333 = vmatmul.bf16.gmra.mxu0 %v988
  %v1334 = vpop.f32.mrf.mxu0
  %v1335 = vadd.f32 %v1321, %v1334
  %v1336 = vpop.f32.mrf.mxu0
  %v1337 = vadd.f32 %v1323, %v1336
  %1338 = vdwg.mxu0
  %1339 = vmatpush.bf16.msra.mxu0 %v1212
  %1340 = vmatpush.bf16.msra.mxu0 %v1208
  %1341 = vmatpush.bf16.msra.mxu0 %v1204
  %1342 = vmatpush.bf16.msra.mxu0 %v1200
  %1343 = vmatpush.bf16.msra.mxu0 %v1196
  %1344 = vmatpush.bf16.msra.mxu0 %v1192
  %1345 = vmatpush.bf16.msra.mxu0 %v1188
  %1346 = vmatpush.bf16.msra.mxu0 %v1184
  %1347 = vmatmul.bf16.gmra.mxu0 %v987
  %v1348 = vpop.f32.mrf.mxu0
  %v1349 = vadd.f32 0.0, %v1348
  %v1350 = vpop.f32.mrf.mxu0
  %v1351 = vadd.f32 0.0, %v1350
  %1352 = vdwg.mxu0
  %1353 = vmatpush.bf16.msra.mxu0 %v1244
  %1354 = vmatpush.bf16.msra.mxu0 %v1240
  %1355 = vmatpush.bf16.msra.mxu0 %v1236
  %1356 = vmatpush.bf16.msra.mxu0 %v1232
  %1357 = vmatpush.bf16.msra.mxu0 %v1228
  %1358 = vmatpush.bf16.msra.mxu0 %v1224
  %1359 = vmatpush.bf16.msra.mxu0 %v1220
  %1360 = vmatpush.bf16.msra.mxu0 %v1216
  %1361 = vmatmul.bf16.gmra.mxu0 %v988
  %v1362 = vpop.f32.mrf.mxu0
  %v1363 = vadd.f32 %v1349, %v1362
  %v1364 = vpop.f32.mrf.mxu0
  %v1365 = vadd.f32 %v1351, %v1364
  %1366 = vdwg.mxu0
  %1367 = vmatpush.bf16.msra.mxu0 %v1213
  %1368 = vmatpush.bf16.msra.mxu0 %v1209
  %1369 = vmatpush.bf16.msra.mxu0 %v1205
  %1370 = vmatpush.bf16.msra.mxu0 %v1201
  %1371 = vmatpush.bf16.msra.mxu0 %v1197
  %1372 = vmatpush.bf16.msra.mxu0 %v1193
  %1373 = vmatpush.bf16.msra.mxu0 %v1189
  %1374 = vmatpush.bf16.msra.mxu0 %v1185
  %1375 = vmatmul.bf16.gmra.mxu0 %v987
  %v1376 = vpop.f32.mrf.mxu0
  %v1377 = vadd.f32 0.0, %v1376
  %v1378 = vpop.f32.mrf.mxu0
  %v1379 = vadd.f32 0.0, %v1378
  %1380 = vdwg.mxu0
  %1381 = vmatpush.bf16.msra.mxu0 %v1245
  %1382 = vmatpush.bf16.msra.mxu0 %v1241
  %1383 = vmatpush.bf16.msra.mxu0 %v1237
  %1384 = vmatpush.bf16.msra.mxu0 %v1233
  %1385 = vmatpush.bf16.msra.mxu0 %v1229
  %1386 = vmatpush.bf16.msra.mxu0 %v1225
  %1387 = vmatpush.bf16.msra.mxu0 %v1221
  %1388 = vmatpush.bf16.msra.mxu0 %v1217
  %1389 = vmatmul.bf16.gmra.mxu0 %v988
  %v1390 = vpop.f32.mrf.mxu0
  %v1391 = vadd.f32 %v1377, %v1390
  %v1392 = vpop.f32.mrf.mxu0
  %v1393 = vadd.f32 %v1379, %v1392
  %1394 = vdwg.mxu0
  %1395 = vmatpush.bf16.msra.mxu0 %v1214
  %1396 = vmatpush.bf16.msra.mxu0 %v1210
  %1397 = vmatpush.bf16.msra.mxu0 %v1206
  %1398 = vmatpush.bf16.msra.mxu0 %v1202
  %1399 = vmatpush.bf16.msra.mxu0 %v1198
  %1400 = vmatpush.bf16.msra.mxu0 %v1194
  %1401 = vmatpush.bf16.msra.mxu0 %v1190
  %1402 = vmatpush.bf16.msra.mxu0 %v1186
  %1403 = vmatmul.bf16.gmra.mxu0 %v987
  %v1404 = vpop.f32.mrf.mxu0
  %v1405 = vadd.f32 0.0, %v1404
  %v1406 = vpop.f32.mrf.mxu0
  %v1407 = vadd.f32 0.0, %v1406
  %1408 = vdwg.mxu0
  %1409 = vmatpush.bf16.msra.mxu0 %v1246
  %1410 = vmatpush.bf16.msra.mxu0 %v1242
  %1411 = vmatpush.bf16.msra.mxu0 %v1238
  %1412 = vmatpush.bf16.msra.mxu0 %v1234
  %1413 = vmatpush.bf16.msra.mxu0 %v1230
  %1414 = vmatpush.bf16.msra.mxu0 %v1226
  %1415 = vmatpush.bf16.msra.mxu0 %v1222
  %1416 = vmatpush.bf16.msra.mxu0 %v1218
  %1417 = vmatmul.bf16.gmra.mxu0 %v988
  %v1418 = vpop.f32.mrf.mxu0
  %v1419 = vadd.f32 %v1405, %v1418
  %v1420 = vpop.f32.mrf.mxu0
  %v1421 = vadd.f32 %v1407, %v1420
  %1422 = vdwg.mxu0
  %v1425 = vunpack.c.l.b16 %v849
  %v1426 = vunpack.c.h.b16 %v849
  %v1427 = vunpack.c.l.b16 %v850
  %v1428 = vunpack.c.h.b16 %v850
  %v1429 = vpack.c.b16 %v1427, %v1425
  %v1430 = vpack.c.b16 %v1428, %v1426
  %v1497 = vunpack.c.l.b16 %v851
  %v1498 = vunpack.c.h.b16 %v851
  %v1499 = vunpack.c.l.b16 %v852
  %v1500 = vunpack.c.h.b16 %v852
  %v1501 = vunpack.c.l.b16 %v853
  %v1502 = vunpack.c.h.b16 %v853
  %v1503 = vunpack.c.l.b16 %v854
  %v1504 = vunpack.c.h.b16 %v854
  %v1505 = vunpack.c.l.b16 %v855
  %v1506 = vunpack.c.h.b16 %v855
  %v1507 = vunpack.c.l.b16 %v856
  %v1508 = vunpack.c.h.b16 %v856
  %v1509 = vunpack.c.l.b16 %v857
  %v1510 = vunpack.c.h.b16 %v857
  %v1511 = vunpack.c.l.b16 %v858
  %v1512 = vunpack.c.h.b16 %v858
  %v1513 = vunpack.c.l.b16 %v859
  %v1514 = vunpack.c.h.b16 %v859
  %v1515 = vunpack.c.l.b16 %v860
  %v1516 = vunpack.c.h.b16 %v860
  %v1517 = vunpack.c.l.b16 %v861
  %v1518 = vunpack.c.h.b16 %v861
  %v1519 = vunpack.c.l.b16 %v862
  %v1520 = vunpack.c.h.b16 %v862
  %v1521 = vunpack.c.l.b16 %v863
  %v1522 = vunpack.c.h.b16 %v863
  %v1523 = vunpack.c.l.b16 %v864
  %v1524 = vunpack.c.h.b16 %v864
  %v1525 = vunpack.c.l.b16 %v865
  %v1526 = vunpack.c.h.b16 %v865
  %v1527 = vunpack.c.l.b16 %v866
  %v1528 = vunpack.c.h.b16 %v866
  %v1529 = vunpack.c.l.b16 %v867
  %v1530 = vunpack.c.h.b16 %v867
  %v1531 = vunpack.c.l.b16 %v868
  %v1532 = vunpack.c.h.b16 %v868
  %v1533 = vunpack.c.l.b16 %v869
  %v1534 = vunpack.c.h.b16 %v869
  %v1535 = vunpack.c.l.b16 %v870
  %v1536 = vunpack.c.h.b16 %v870
  %v1537 = vunpack.c.l.b16 %v871
  %v1538 = vunpack.c.h.b16 %v871
  %v1539 = vunpack.c.l.b16 %v872
  %v1540 = vunpack.c.h.b16 %v872
  %v1541 = vunpack.c.l.b16 %v873
  %v1542 = vunpack.c.h.b16 %v873
  %v1543 = vunpack.c.l.b16 %v874
  %v1544 = vunpack.c.h.b16 %v874
  %v1545 = vunpack.c.l.b16 %v875
  %v1546 = vunpack.c.h.b16 %v875
  %v1547 = vunpack.c.l.b16 %v876
  %v1548 = vunpack.c.h.b16 %v876
  %v1549 = vunpack.c.l.b16 %v877
  %v1550 = vunpack.c.h.b16 %v877
  %v1551 = vunpack.c.l.b16 %v878
  %v1552 = vunpack.c.h.b16 %v878
  %v1553 = vunpack.c.l.b16 %v879
  %v1554 = vunpack.c.h.b16 %v879
  %v1555 = vunpack.c.l.b16 %v880
  %v1556 = vunpack.c.h.b16 %v880
  %v1557 = vunpack.c.l.b16 %v881
  %v1558 = vunpack.c.h.b16 %v881
  %v1559 = vunpack.c.l.b16 %v882
  %v1560 = vunpack.c.h.b16 %v882
  %v1561 = vunpack.c.l.b16 %v883
  %v1562 = vunpack.c.h.b16 %v883
  %v1563 = vunpack.c.l.b16 %v884
  %v1564 = vunpack.c.h.b16 %v884
  %v1565 = vunpack.c.l.b16 %v885
  %v1566 = vunpack.c.h.b16 %v885
  %v1567 = vunpack.c.l.b16 %v886
  %v1568 = vunpack.c.h.b16 %v886
  %v1569 = vunpack.c.l.b16 %v887
  %v1570 = vunpack.c.h.b16 %v887
  %v1571 = vunpack.c.l.b16 %v888
  %v1572 = vunpack.c.h.b16 %v888
  %v1573 = vunpack.c.l.b16 %v889
  %v1574 = vunpack.c.h.b16 %v889
  %v1575 = vunpack.c.l.b16 %v890
  %v1576 = vunpack.c.h.b16 %v890
  %v1577 = vunpack.c.l.b16 %v891
  %v1578 = vunpack.c.h.b16 %v891
  %v1579 = vunpack.c.l.b16 %v892
  %v1580 = vunpack.c.h.b16 %v892
  %v1581 = vunpack.c.l.b16 %v893
  %v1582 = vunpack.c.h.b16 %v893
  %v1583 = vunpack.c.l.b16 %v894
  %v1584 = vunpack.c.h.b16 %v894
  %v1585 = vunpack.c.l.b16 %v895
  %v1586 = vunpack.c.h.b16 %v895
  %v1587 = vunpack.c.l.b16 %v896
  %v1588 = vunpack.c.h.b16 %v896
  %v1589 = vunpack.c.l.b16 %v897
  %v1590 = vunpack.c.h.b16 %v897
  %v1591 = vunpack.c.l.b16 %v898
  %v1592 = vunpack.c.h.b16 %v898
  %v1593 = vunpack.c.l.b16 %v899
  %v1594 = vunpack.c.h.b16 %v899
  %v1595 = vunpack.c.l.b16 %v900
  %v1596 = vunpack.c.h.b16 %v900
  %v1597 = vunpack.c.l.b16 %v901
  %v1598 = vunpack.c.h.b16 %v901
  %v1599 = vunpack.c.l.b16 %v902
  %v1600 = vunpack.c.h.b16 %v902
  %v1601 = vunpack.c.l.b16 %v903
  %v1602 = vunpack.c.h.b16 %v903
  %v1603 = vunpack.c.l.b16 %v904
  %v1604 = vunpack.c.h.b16 %v904
  %v1605 = vunpack.c.l.b16 %v905
  %v1606 = vunpack.c.h.b16 %v905
  %v1607 = vunpack.c.l.b16 %v906
  %v1608 = vunpack.c.h.b16 %v906
  %v1609 = vunpack.c.l.b16 %v907
  %v1610 = vunpack.c.h.b16 %v907
  %v1611 = vunpack.c.l.b16 %v908
  %v1612 = vunpack.c.h.b16 %v908
  %v1613 = vunpack.c.l.b16 %v909
  %v1614 = vunpack.c.h.b16 %v909
  %v1615 = vunpack.c.l.b16 %v910
  %v1616 = vunpack.c.h.b16 %v910
  %v1617 = vunpack.c.l.b16 %v911
  %v1618 = vunpack.c.h.b16 %v911
  %v1619 = vunpack.c.l.b16 %v912
  %v1620 = vunpack.c.h.b16 %v912
  %v1621 = vunpack.c.l.b16 %v913
  %v1622 = vunpack.c.h.b16 %v913
  %v1623 = vunpack.c.l.b16 %v914
  %v1624 = vunpack.c.h.b16 %v914
  %v1625 = vpack.c.b16 %v1501, %v1497
  %v1626 = vpack.c.b16 %v1502, %v1498
  %v1627 = vpack.c.b16 %v1503, %v1499
  %v1628 = vpack.c.b16 %v1504, %v1500
  %v1629 = vpack.c.b16 %v1509, %v1505
  %v1630 = vpack.c.b16 %v1510, %v1506
  %v1631 = vpack.c.b16 %v1511, %v1507
  %v1632 = vpack.c.b16 %v1512, %v1508
  %v1633 = vpack.c.b16 %v1517, %v1513
  %v1634 = vpack.c.b16 %v1518, %v1514
  %v1635 = vpack.c.b16 %v1519, %v1515
  %v1636 = vpack.c.b16 %v1520, %v1516
  %v1637 = vpack.c.b16 %v1525, %v1521
  %v1638 = vpack.c.b16 %v1526, %v1522
  %v1639 = vpack.c.b16 %v1527, %v1523
  %v1640 = vpack.c.b16 %v1528, %v1524
  %v1641 = vpack.c.b16 %v1533, %v1529
  %v1642 = vpack.c.b16 %v1534, %v1530
  %v1643 = vpack.c.b16 %v1535, %v1531
  %v1644 = vpack.c.b16 %v1536, %v1532
  %v1645 = vpack.c.b16 %v1541, %v1537
  %v1646 = vpack.c.b16 %v1542, %v1538
  %v1647 = vpack.c.b16 %v1543, %v1539
  %v1648 = vpack.c.b16 %v1544, %v1540
  %v1649 = vpack.c.b16 %v1549, %v1545
  %v1650 = vpack.c.b16 %v1550, %v1546
  %v1651 = vpack.c.b16 %v1551, %v1547
  %v1652 = vpack.c.b16 %v1552, %v1548
  %v1653 = vpack.c.b16 %v1557, %v1553
  %v1654 = vpack.c.b16 %v1558, %v1554
  %v1655 = vpack.c.b16 %v1559, %v1555
  %v1656 = vpack.c.b16 %v1560, %v1556
  %v1657 = vpack.c.b16 %v1565, %v1561
  %v1658 = vpack.c.b16 %v1566, %v1562
  %v1659 = vpack.c.b16 %v1567, %v1563
  %v1660 = vpack.c.b16 %v1568, %v1564
  %v1661 = vpack.c.b16 %v1573, %v1569
  %v1662 = vpack.c.b16 %v1574, %v1570
  %v1663 = vpack.c.b16 %v1575, %v1571
  %v1664 = vpack.c.b16 %v1576, %v1572
  %v1665 = vpack.c.b16 %v1581, %v1577
  %v1666 = vpack.c.b16 %v1582, %v1578
  %v1667 = vpack.c.b16 %v1583, %v1579
  %v1668 = vpack.c.b16 %v1584, %v1580
  %v1669 = vpack.c.b16 %v1589, %v1585
  %v1670 = vpack.c.b16 %v1590, %v1586
  %v1671 = vpack.c.b16 %v1591, %v1587
  %v1672 = vpack.c.b16 %v1592, %v1588
  %v1673 = vpack.c.b16 %v1597, %v1593
  %v1674 = vpack.c.b16 %v1598, %v1594
  %v1675 = vpack.c.b16 %v1599, %v1595
  %v1676 = vpack.c.b16 %v1600, %v1596
  %v1677 = vpack.c.b16 %v1605, %v1601
  %v1678 = vpack.c.b16 %v1606, %v1602
  %v1679 = vpack.c.b16 %v1607, %v1603
  %v1680 = vpack.c.b16 %v1608, %v1604
  %v1681 = vpack.c.b16 %v1613, %v1609
  %v1682 = vpack.c.b16 %v1614, %v1610
  %v1683 = vpack.c.b16 %v1615, %v1611
  %v1684 = vpack.c.b16 %v1616, %v1612
  %v1685 = vpack.c.b16 %v1621, %v1617
  %v1686 = vpack.c.b16 %v1622, %v1618
  %v1687 = vpack.c.b16 %v1623, %v1619
  %v1688 = vpack.c.b16 %v1624, %v1620
  %1753 = vmatpush.bf16.msra.mxu0 %v1653
  %1754 = vmatpush.bf16.msra.mxu0 %v1649
  %1755 = vmatpush.bf16.msra.mxu0 %v1645
  %1756 = vmatpush.bf16.msra.mxu0 %v1641
  %1757 = vmatpush.bf16.msra.mxu0 %v1637
  %1758 = vmatpush.bf16.msra.mxu0 %v1633
  %1759 = vmatpush.bf16.msra.mxu0 %v1629
  %1760 = vmatpush.bf16.msra.mxu0 %v1625
  %1761 = vmatmul.bf16.gmra.mxu0 %v1429
  %v1762 = vpop.f32.mrf.mxu0
  %v1763 = vadd.f32 %v1335, %v1762
  %v1764 = vpop.f32.mrf.mxu0
  %v1765 = vadd.f32 %v1337, %v1764
  %1766 = vdwg.mxu0
  %1767 = vmatpush.bf16.msra.mxu0 %v1685
  %1768 = vmatpush.bf16.msra.mxu0 %v1681
  %1769 = vmatpush.bf16.msra.mxu0 %v1677
  %1770 = vmatpush.bf16.msra.mxu0 %v1673
  %1771 = vmatpush.bf16.msra.mxu0 %v1669
  %1772 = vmatpush.bf16.msra.mxu0 %v1665
  %1773 = vmatpush.bf16.msra.mxu0 %v1661
  %1774 = vmatpush.bf16.msra.mxu0 %v1657
  %1775 = vmatmul.bf16.gmra.mxu0 %v1430
  %v1776 = vpop.f32.mrf.mxu0
  %v1777 = vadd.f32 %v1763, %v1776
  %v1778 = vpop.f32.mrf.mxu0
  %v1779 = vadd.f32 %v1765, %v1778
  %1780 = vdwg.mxu0
  %1781 = vmatpush.bf16.msra.mxu0 %v1654
  %1782 = vmatpush.bf16.msra.mxu0 %v1650
  %1783 = vmatpush.bf16.msra.mxu0 %v1646
  %1784 = vmatpush.bf16.msra.mxu0 %v1642
  %1785 = vmatpush.bf16.msra.mxu0 %v1638
  %1786 = vmatpush.bf16.msra.mxu0 %v1634
  %1787 = vmatpush.bf16.msra.mxu0 %v1630
  %1788 = vmatpush.bf16.msra.mxu0 %v1626
  %1789 = vmatmul.bf16.gmra.mxu0 %v1429
  %v1790 = vpop.f32.mrf.mxu0
  %v1791 = vadd.f32 %v1363, %v1790
  %v1792 = vpop.f32.mrf.mxu0
  %v1793 = vadd.f32 %v1365, %v1792
  %1794 = vdwg.mxu0
  %1795 = vmatpush.bf16.msra.mxu0 %v1686
  %1796 = vmatpush.bf16.msra.mxu0 %v1682
  %1797 = vmatpush.bf16.msra.mxu0 %v1678
  %1798 = vmatpush.bf16.msra.mxu0 %v1674
  %1799 = vmatpush.bf16.msra.mxu0 %v1670
  %1800 = vmatpush.bf16.msra.mxu0 %v1666
  %1801 = vmatpush.bf16.msra.mxu0 %v1662
  %1802 = vmatpush.bf16.msra.mxu0 %v1658
  %1803 = vmatmul.bf16.gmra.mxu0 %v1430
  %v1804 = vpop.f32.mrf.mxu0
  %v1805 = vadd.f32 %v1791, %v1804
  %v1806 = vpop.f32.mrf.mxu0
  %v1807 = vadd.f32 %v1793, %v1806
  %1808 = vdwg.mxu0
  %1809 = vmatpush.bf16.msra.mxu0 %v1655
  %1810 = vmatpush.bf16.msra.mxu0 %v1651
  %1811 = vmatpush.bf16.msra.mxu0 %v1647
  %1812 = vmatpush.bf16.msra.mxu0 %v1643
  %1813 = vmatpush.bf16.msra.mxu0 %v1639
  %1814 = vmatpush.bf16.msra.mxu0 %v1635
  %1815 = vmatpush.bf16.msra.mxu0 %v1631
  %1816 = vmatpush.bf16.msra.mxu0 %v1627
  %1817 = vmatmul.bf16.gmra.mxu0 %v1429
  %v1818 = vpop.f32.mrf.mxu0
  %v1819 = vadd.f32 %v1391, %v1818
  %v1820 = vpop.f32.mrf.mxu0
  %v1821 = vadd.f32 %v1393, %v1820
  %1822 = vdwg.mxu0
  %1823 = vmatpush.bf16.msra.mxu0 %v1687
  %1824 = vmatpush.bf16.msra.mxu0 %v1683
  %1825 = vmatpush.bf16.msra.mxu0 %v1679
  %1826 = vmatpush.bf16.msra.mxu0 %v1675
  %1827 = vmatpush.bf16.msra.mxu0 %v1671
  %1828 = vmatpush.bf16.msra.mxu0 %v1667
  %1829 = vmatpush.bf16.msra.mxu0 %v1663
  %1830 = vmatpush.bf16.msra.mxu0 %v1659
  %1831 = vmatmul.bf16.gmra.mxu0 %v1430
  %v1832 = vpop.f32.mrf.mxu0
  %v1833 = vadd.f32 %v1819, %v1832
  %v1834 = vpop.f32.mrf.mxu0
  %v1835 = vadd.f32 %v1821, %v1834
  %1836 = vdwg.mxu0
  %1837 = vmatpush.bf16.msra.mxu0 %v1656
  %1838 = vmatpush.bf16.msra.mxu0 %v1652
  %1839 = vmatpush.bf16.msra.mxu0 %v1648
  %1840 = vmatpush.bf16.msra.mxu0 %v1644
  %1841 = vmatpush.bf16.msra.mxu0 %v1640
  %1842 = vmatpush.bf16.msra.mxu0 %v1636
  %1843 = vmatpush.bf16.msra.mxu0 %v1632
  %1844 = vmatpush.bf16.msra.mxu0 %v1628
  %1845 = vmatmul.bf16.gmra.mxu0 %v1429
  %v1846 = vpop.f32.mrf.mxu0
  %v1847 = vadd.f32 %v1419, %v1846
  %v1848 = vpop.f32.mrf.mxu0
  %v1849 = vadd.f32 %v1421, %v1848
  %1850 = vdwg.mxu0
  %1851 = vmatpush.bf16.msra.mxu0 %v1688
  %1852 = vmatpush.bf16.msra.mxu0 %v1684
  %1853 = vmatpush.bf16.msra.mxu0 %v1680
  %1854 = vmatpush.bf16.msra.mxu0 %v1676
  %1855 = vmatpush.bf16.msra.mxu0 %v1672
  %1856 = vmatpush.bf16.msra.mxu0 %v1668
  %1857 = vmatpush.bf16.msra.mxu0 %v1664
  %1858 = vmatpush.bf16.msra.mxu0 %v1660
  %1859 = vmatmul.bf16.gmra.mxu0 %v1430
  %v1860 = vpop.f32.mrf.mxu0
  %v1861 = vadd.f32 %v1847, %v1860
  %v1862 = vpop.f32.mrf.mxu0
  %v1863 = vadd.f32 %v1849, %v1862
  %1864 = vdwg.mxu0
  %v1865 = vpack.c.bf16 %v819, %v817
  %v1866 = vpack.c.bf16 %v847, %v845
  %v1867 = vld [vmem:[%s11] sm:$0xff]
  %v1868 = vld [vmem:[%s11 + $0x8] sm:$0xff]
  %v1869 = vld [vmem:[%s11 + $0x10] sm:$0xff]
  %v1870 = vld [vmem:[%s11 + $0x18] sm:$0xff]
  %v1871 = vld [vmem:[%s11 + $0x20] sm:$0xff]
  %v1872 = vld [vmem:[%s11 + $0x28] sm:$0xff]
  %v1873 = vld [vmem:[%s11 + $0x30] sm:$0xff]
  %v1874 = vld [vmem:[%s11 + $0x38] sm:$0xff]
  %v1875 = vld [vmem:[%s11 + $0x40] sm:$0xff]
  %v1876 = vld [vmem:[%s11 + $0x48] sm:$0xff]
  %v1877 = vld [vmem:[%s11 + $0x50] sm:$0xff]
  %v1878 = vld [vmem:[%s11 + $0x58] sm:$0xff]
  %v1879 = vld [vmem:[%s11 + $0x60] sm:$0xff]
  %v1880 = vld [vmem:[%s11 + $0x68] sm:$0xff]
  %v1881 = vld [vmem:[%s11 + $0x70] sm:$0xff]
  %v1882 = vld [vmem:[%s11 + $0x78] sm:$0xff]
  %v1883 = vld [vmem:[%s11 + $0x80] sm:$0xff]
  %v1884 = vld [vmem:[%s11 + $0x88] sm:$0xff]
  %v1885 = vld [vmem:[%s11 + $0x90] sm:$0xff]
  %v1886 = vld [vmem:[%s11 + $0x98] sm:$0xff]
  %v1887 = vld [vmem:[%s11 + $0xa0] sm:$0xff]
  %v1888 = vld [vmem:[%s11 + $0xa8] sm:$0xff]
  %v1889 = vld [vmem:[%s11 + $0xb0] sm:$0xff]
  %v1890 = vld [vmem:[%s11 + $0xb8] sm:$0xff]
  %v1891 = vld [vmem:[%s11 + $0xc0] sm:$0xff]
  %v1892 = vld [vmem:[%s11 + $0xc8] sm:$0xff]
  %v1893 = vld [vmem:[%s11 + $0xd0] sm:$0xff]
  %v1894 = vld [vmem:[%s11 + $0xd8] sm:$0xff]
  %v1895 = vld [vmem:[%s11 + $0xe0] sm:$0xff]
  %v1896 = vld [vmem:[%s11 + $0xe8] sm:$0xff]
  %v1897 = vld [vmem:[%s11 + $0xf0] sm:$0xff]
  %v1898 = vld [vmem:[%s11 + $0xf8] sm:$0xff]
  %v1899 = vld [vmem:[%s11 + $0x100] sm:$0xff]
  %v1900 = vld [vmem:[%s11 + $0x108] sm:$0xff]
  %v1901 = vld [vmem:[%s11 + $0x110] sm:$0xff]
  %v1902 = vld [vmem:[%s11 + $0x118] sm:$0xff]
  %v1903 = vld [vmem:[%s11 + $0x120] sm:$0xff]
  %v1904 = vld [vmem:[%s11 + $0x128] sm:$0xff]
  %v1905 = vld [vmem:[%s11 + $0x130] sm:$0xff]
  %v1906 = vld [vmem:[%s11 + $0x138] sm:$0xff]
  %v1907 = vld [vmem:[%s11 + $0x140] sm:$0xff]
  %v1908 = vld [vmem:[%s11 + $0x148] sm:$0xff]
  %v1909 = vld [vmem:[%s11 + $0x150] sm:$0xff]
  %v1910 = vld [vmem:[%s11 + $0x158] sm:$0xff]
  %v1911 = vld [vmem:[%s11 + $0x160] sm:$0xff]
  %v1912 = vld [vmem:[%s11 + $0x168] sm:$0xff]
  %v1913 = vld [vmem:[%s11 + $0x170] sm:$0xff]
  %v1914 = vld [vmem:[%s11 + $0x178] sm:$0xff]
  %v1915 = vld [vmem:[%s11 + $0x180] sm:$0xff]
  %v1916 = vld [vmem:[%s11 + $0x188] sm:$0xff]
  %v1917 = vld [vmem:[%s11 + $0x190] sm:$0xff]
  %v1918 = vld [vmem:[%s11 + $0x198] sm:$0xff]
  %v1919 = vld [vmem:[%s11 + $0x1a0] sm:$0xff]
  %v1920 = vld [vmem:[%s11 + $0x1a8] sm:$0xff]
  %v1921 = vld [vmem:[%s11 + $0x1b0] sm:$0xff]
  %v1922 = vld [vmem:[%s11 + $0x1b8] sm:$0xff]
  %v1923 = vld [vmem:[%s11 + $0x1c0] sm:$0xff]
  %v1924 = vld [vmem:[%s11 + $0x1c8] sm:$0xff]
  %v1925 = vld [vmem:[%s11 + $0x1d0] sm:$0xff]
  %v1926 = vld [vmem:[%s11 + $0x1d8] sm:$0xff]
  %v1927 = vld [vmem:[%s11 + $0x1e0] sm:$0xff]
  %v1928 = vld [vmem:[%s11 + $0x1e8] sm:$0xff]
  %v1929 = vld [vmem:[%s11 + $0x1f0] sm:$0xff]
  %v1930 = vld [vmem:[%s11 + $0x1f8] sm:$0xff]
  %v1995 = vunpack.c.l.b16 %v1867
  %v1996 = vunpack.c.h.b16 %v1867
  %v1997 = vunpack.c.l.b16 %v1868
  %v1998 = vunpack.c.h.b16 %v1868
  %v1999 = vunpack.c.l.b16 %v1869
  %v2000 = vunpack.c.h.b16 %v1869
  %v2001 = vunpack.c.l.b16 %v1870
  %v2002 = vunpack.c.h.b16 %v1870
  %v2003 = vunpack.c.l.b16 %v1871
  %v2004 = vunpack.c.h.b16 %v1871
  %v2005 = vunpack.c.l.b16 %v1872
  %v2006 = vunpack.c.h.b16 %v1872
  %v2007 = vunpack.c.l.b16 %v1873
  %v2008 = vunpack.c.h.b16 %v1873
  %v2009 = vunpack.c.l.b16 %v1874
  %v2010 = vunpack.c.h.b16 %v1874
  %v2011 = vunpack.c.l.b16 %v1875
  %v2012 = vunpack.c.h.b16 %v1875
  %v2013 = vunpack.c.l.b16 %v1876
  %v2014 = vunpack.c.h.b16 %v1876
  %v2015 = vunpack.c.l.b16 %v1877
  %v2016 = vunpack.c.h.b16 %v1877
  %v2017 = vunpack.c.l.b16 %v1878
  %v2018 = vunpack.c.h.b16 %v1878
  %v2019 = vunpack.c.l.b16 %v1879
  %v2020 = vunpack.c.h.b16 %v1879
  %v2021 = vunpack.c.l.b16 %v1880
  %v2022 = vunpack.c.h.b16 %v1880
  %v2023 = vunpack.c.l.b16 %v1881
  %v2024 = vunpack.c.h.b16 %v1881
  %v2025 = vunpack.c.l.b16 %v1882
  %v2026 = vunpack.c.h.b16 %v1882
  %v2027 = vunpack.c.l.b16 %v1883
  %v2028 = vunpack.c.h.b16 %v1883
  %v2029 = vunpack.c.l.b16 %v1884
  %v2030 = vunpack.c.h.b16 %v1884
  %v2031 = vunpack.c.l.b16 %v1885
  %v2032 = vunpack.c.h.b16 %v1885
  %v2033 = vunpack.c.l.b16 %v1886
  %v2034 = vunpack.c.h.b16 %v1886
  %v2035 = vunpack.c.l.b16 %v1887
  %v2036 = vunpack.c.h.b16 %v1887
  %v2037 = vunpack.c.l.b16 %v1888
  %v2038 = vunpack.c.h.b16 %v1888
  %v2039 = vunpack.c.l.b16 %v1889
  %v2040 = vunpack.c.h.b16 %v1889
  %v2041 = vunpack.c.l.b16 %v1890
  %v2042 = vunpack.c.h.b16 %v1890
  %v2043 = vunpack.c.l.b16 %v1891
  %v2044 = vunpack.c.h.b16 %v1891
  %v2045 = vunpack.c.l.b16 %v1892
  %v2046 = vunpack.c.h.b16 %v1892
  %v2047 = vunpack.c.l.b16 %v1893
  %v2048 = vunpack.c.h.b16 %v1893
  %v2049 = vunpack.c.l.b16 %v1894
  %v2050 = vunpack.c.h.b16 %v1894
  %v2051 = vunpack.c.l.b16 %v1895
  %v2052 = vunpack.c.h.b16 %v1895
  %v2053 = vunpack.c.l.b16 %v1896
  %v2054 = vunpack.c.h.b16 %v1896
  %v2055 = vunpack.c.l.b16 %v1897
  %v2056 = vunpack.c.h.b16 %v1897
  %v2057 = vunpack.c.l.b16 %v1898
  %v2058 = vunpack.c.h.b16 %v1898
  %v2059 = vunpack.c.l.b16 %v1899
  %v2060 = vunpack.c.h.b16 %v1899
  %v2061 = vunpack.c.l.b16 %v1900
  %v2062 = vunpack.c.h.b16 %v1900
  %v2063 = vunpack.c.l.b16 %v1901
  %v2064 = vunpack.c.h.b16 %v1901
  %v2065 = vunpack.c.l.b16 %v1902
  %v2066 = vunpack.c.h.b16 %v1902
  %v2067 = vunpack.c.l.b16 %v1903
  %v2068 = vunpack.c.h.b16 %v1903
  %v2069 = vunpack.c.l.b16 %v1904
  %v2070 = vunpack.c.h.b16 %v1904
  %v2071 = vunpack.c.l.b16 %v1905
  %v2072 = vunpack.c.h.b16 %v1905
  %v2073 = vunpack.c.l.b16 %v1906
  %v2074 = vunpack.c.h.b16 %v1906
  %v2075 = vunpack.c.l.b16 %v1907
  %v2076 = vunpack.c.h.b16 %v1907
  %v2077 = vunpack.c.l.b16 %v1908
  %v2078 = vunpack.c.h.b16 %v1908
  %v2079 = vunpack.c.l.b16 %v1909
  %v2080 = vunpack.c.h.b16 %v1909
  %v2081 = vunpack.c.l.b16 %v1910
  %v2082 = vunpack.c.h.b16 %v1910
  %v2083 = vunpack.c.l.b16 %v1911
  %v2084 = vunpack.c.h.b16 %v1911
  %v2085 = vunpack.c.l.b16 %v1912
  %v2086 = vunpack.c.h.b16 %v1912
  %v2087 = vunpack.c.l.b16 %v1913
  %v2088 = vunpack.c.h.b16 %v1913
  %v2089 = vunpack.c.l.b16 %v1914
  %v2090 = vunpack.c.h.b16 %v1914
  %v2091 = vunpack.c.l.b16 %v1915
  %v2092 = vunpack.c.h.b16 %v1915
  %v2093 = vunpack.c.l.b16 %v1916
  %v2094 = vunpack.c.h.b16 %v1916
  %v2095 = vunpack.c.l.b16 %v1917
  %v2096 = vunpack.c.h.b16 %v1917
  %v2097 = vunpack.c.l.b16 %v1918
  %v2098 = vunpack.c.h.b16 %v1918
  %v2099 = vunpack.c.l.b16 %v1919
  %v2100 = vunpack.c.h.b16 %v1919
  %v2101 = vunpack.c.l.b16 %v1920
  %v2102 = vunpack.c.h.b16 %v1920
  %v2103 = vunpack.c.l.b16 %v1921
  %v2104 = vunpack.c.h.b16 %v1921
  %v2105 = vunpack.c.l.b16 %v1922
  %v2106 = vunpack.c.h.b16 %v1922
  %v2107 = vunpack.c.l.b16 %v1923
  %v2108 = vunpack.c.h.b16 %v1923
  %v2109 = vunpack.c.l.b16 %v1924
  %v2110 = vunpack.c.h.b16 %v1924
  %v2111 = vunpack.c.l.b16 %v1925
  %v2112 = vunpack.c.h.b16 %v1925
  %v2113 = vunpack.c.l.b16 %v1926
  %v2114 = vunpack.c.h.b16 %v1926
  %v2115 = vunpack.c.l.b16 %v1927
  %v2116 = vunpack.c.h.b16 %v1927
  %v2117 = vunpack.c.l.b16 %v1928
  %v2118 = vunpack.c.h.b16 %v1928
  %v2119 = vunpack.c.l.b16 %v1929
  %v2120 = vunpack.c.h.b16 %v1929
  %v2121 = vunpack.c.l.b16 %v1930
  %v2122 = vunpack.c.h.b16 %v1930
  %v2123 = vpack.c.b16 %v1999, %v1995
  %v2124 = vpack.c.b16 %v2000, %v1996
  %v2125 = vpack.c.b16 %v2001, %v1997
  %v2126 = vpack.c.b16 %v2002, %v1998
  %v2127 = vpack.c.b16 %v2007, %v2003
  %v2128 = vpack.c.b16 %v2008, %v2004
  %v2129 = vpack.c.b16 %v2009, %v2005
  %v2130 = vpack.c.b16 %v2010, %v2006
  %v2131 = vpack.c.b16 %v2015, %v2011
  %v2132 = vpack.c.b16 %v2016, %v2012
  %v2133 = vpack.c.b16 %v2017, %v2013
  %v2134 = vpack.c.b16 %v2018, %v2014
  %v2135 = vpack.c.b16 %v2023, %v2019
  %v2136 = vpack.c.b16 %v2024, %v2020
  %v2137 = vpack.c.b16 %v2025, %v2021
  %v2138 = vpack.c.b16 %v2026, %v2022
  %v2139 = vpack.c.b16 %v2031, %v2027
  %v2140 = vpack.c.b16 %v2032, %v2028
  %v2141 = vpack.c.b16 %v2033, %v2029
  %v2142 = vpack.c.b16 %v2034, %v2030
  %v2143 = vpack.c.b16 %v2039, %v2035
  %v2144 = vpack.c.b16 %v2040, %v2036
  %v2145 = vpack.c.b16 %v2041, %v2037
  %v2146 = vpack.c.b16 %v2042, %v2038
  %v2147 = vpack.c.b16 %v2047, %v2043
  %v2148 = vpack.c.b16 %v2048, %v2044
  %v2149 = vpack.c.b16 %v2049, %v2045
  %v2150 = vpack.c.b16 %v2050, %v2046
  %v2151 = vpack.c.b16 %v2055, %v2051
  %v2152 = vpack.c.b16 %v2056, %v2052
  %v2153 = vpack.c.b16 %v2057, %v2053
  %v2154 = vpack.c.b16 %v2058, %v2054
  %v2155 = vpack.c.b16 %v2063, %v2059
  %v2156 = vpack.c.b16 %v2064, %v2060
  %v2157 = vpack.c.b16 %v2065, %v2061
  %v2158 = vpack.c.b16 %v2066, %v2062
  %v2159 = vpack.c.b16 %v2071, %v2067
  %v2160 = vpack.c.b16 %v2072, %v2068
  %v2161 = vpack.c.b16 %v2073, %v2069
  %v2162 = vpack.c.b16 %v2074, %v2070
  %v2163 = vpack.c.b16 %v2079, %v2075
  %v2164 = vpack.c.b16 %v2080, %v2076
  %v2165 = vpack.c.b16 %v2081, %v2077
  %v2166 = vpack.c.b16 %v2082, %v2078
  %v2167 = vpack.c.b16 %v2087, %v2083
  %v2168 = vpack.c.b16 %v2088, %v2084
  %v2169 = vpack.c.b16 %v2089, %v2085
  %v2170 = vpack.c.b16 %v2090, %v2086
  %v2171 = vpack.c.b16 %v2095, %v2091
  %v2172 = vpack.c.b16 %v2096, %v2092
  %v2173 = vpack.c.b16 %v2097, %v2093
  %v2174 = vpack.c.b16 %v2098, %v2094
  %v2175 = vpack.c.b16 %v2103, %v2099
  %v2176 = vpack.c.b16 %v2104, %v2100
  %v2177 = vpack.c.b16 %v2105, %v2101
  %v2178 = vpack.c.b16 %v2106, %v2102
  %v2179 = vpack.c.b16 %v2111, %v2107
  %v2180 = vpack.c.b16 %v2112, %v2108
  %v2181 = vpack.c.b16 %v2113, %v2109
  %v2182 = vpack.c.b16 %v2114, %v2110
  %v2183 = vpack.c.b16 %v2119, %v2115
  %v2184 = vpack.c.b16 %v2120, %v2116
  %v2185 = vpack.c.b16 %v2121, %v2117
  %v2186 = vpack.c.b16 %v2122, %v2118
  %2251 = vmatpush.bf16.msra.mxu0 %v2151
  %2252 = vmatpush.bf16.msra.mxu0 %v2147
  %2253 = vmatpush.bf16.msra.mxu0 %v2143
  %2254 = vmatpush.bf16.msra.mxu0 %v2139
  %2255 = vmatpush.bf16.msra.mxu0 %v2135
  %2256 = vmatpush.bf16.msra.mxu0 %v2131
  %2257 = vmatpush.bf16.msra.mxu0 %v2127
  %2258 = vmatpush.bf16.msra.mxu0 %v2123
  %2259 = vmatmul.bf16.gmra.mxu0 %v1865
  %v2260 = vpop.f32.mrf.mxu0
  %v2261 = vadd.f32 0.0, %v2260
  %v2262 = vpop.f32.mrf.mxu0
  %v2263 = vadd.f32 0.0, %v2262
  %2264 = vdwg.mxu0
  %2265 = vmatpush.bf16.msra.mxu0 %v2183
  %2266 = vmatpush.bf16.msra.mxu0 %v2179
  %2267 = vmatpush.bf16.msra.mxu0 %v2175
  %2268 = vmatpush.bf16.msra.mxu0 %v2171
  %2269 = vmatpush.bf16.msra.mxu0 %v2167
  %2270 = vmatpush.bf16.msra.mxu0 %v2163
  %2271 = vmatpush.bf16.msra.mxu0 %v2159
  %2272 = vmatpush.bf16.msra.mxu0 %v2155
  %2273 = vmatmul.bf16.gmra.mxu0 %v1866
  %v2274 = vpop.f32.mrf.mxu0
  %v2275 = vadd.f32 %v2261, %v2274
  %v2276 = vpop.f32.mrf.mxu0
  %v2277 = vadd.f32 %v2263, %v2276
  %2278 = vdwg.mxu0
  %2279 = vmatpush.bf16.msra.mxu0 %v2152
  %2280 = vmatpush.bf16.msra.mxu0 %v2148
  %2281 = vmatpush.bf16.msra.mxu0 %v2144
  %2282 = vmatpush.bf16.msra.mxu0 %v2140
  %2283 = vmatpush.bf16.msra.mxu0 %v2136
  %2284 = vmatpush.bf16.msra.mxu0 %v2132
  %2285 = vmatpush.bf16.msra.mxu0 %v2128
  %2286 = vmatpush.bf16.msra.mxu0 %v2124
  %2287 = vmatmul.bf16.gmra.mxu0 %v1865
  %v2288 = vpop.f32.mrf.mxu0
  %v2289 = vadd.f32 0.0, %v2288
  %v2290 = vpop.f32.mrf.mxu0
  %v2291 = vadd.f32 0.0, %v2290
  %2292 = vdwg.mxu0
  %2293 = vmatpush.bf16.msra.mxu0 %v2184
  %2294 = vmatpush.bf16.msra.mxu0 %v2180
  %2295 = vmatpush.bf16.msra.mxu0 %v2176
  %2296 = vmatpush.bf16.msra.mxu0 %v2172
  %2297 = vmatpush.bf16.msra.mxu0 %v2168
  %2298 = vmatpush.bf16.msra.mxu0 %v2164
  %2299 = vmatpush.bf16.msra.mxu0 %v2160
  %2300 = vmatpush.bf16.msra.mxu0 %v2156
  %2301 = vmatmul.bf16.gmra.mxu0 %v1866
  %v2302 = vpop.f32.mrf.mxu0
  %v2303 = vadd.f32 %v2289, %v2302
  %v2304 = vpop.f32.mrf.mxu0
  %v2305 = vadd.f32 %v2291, %v2304
  %2306 = vdwg.mxu0
  %2307 = vmatpush.bf16.msra.mxu0 %v2153
  %2308 = vmatpush.bf16.msra.mxu0 %v2149
  %2309 = vmatpush.bf16.msra.mxu0 %v2145
  %2310 = vmatpush.bf16.msra.mxu0 %v2141
  %2311 = vmatpush.bf16.msra.mxu0 %v2137
  %2312 = vmatpush.bf16.msra.mxu0 %v2133
  %2313 = vmatpush.bf16.msra.mxu0 %v2129
  %2314 = vmatpush.bf16.msra.mxu0 %v2125
  %2315 = vmatmul.bf16.gmra.mxu0 %v1865
  %v2316 = vpop.f32.mrf.mxu0
  %v2317 = vadd.f32 0.0, %v2316
  %v2318 = vpop.f32.mrf.mxu0
  %v2319 = vadd.f32 0.0, %v2318
  %2320 = vdwg.mxu0
  %2321 = vmatpush.bf16.msra.mxu0 %v2185
  %2322 = vmatpush.bf16.msra.mxu0 %v2181
  %2323 = vmatpush.bf16.msra.mxu0 %v2177
  %2324 = vmatpush.bf16.msra.mxu0 %v2173
  %2325 = vmatpush.bf16.msra.mxu0 %v2169
  %2326 = vmatpush.bf16.msra.mxu0 %v2165
  %2327 = vmatpush.bf16.msra.mxu0 %v2161
  %2328 = vmatpush.bf16.msra.mxu0 %v2157
  %2329 = vmatmul.bf16.gmra.mxu0 %v1866
  %v2330 = vpop.f32.mrf.mxu0
  %v2331 = vadd.f32 %v2317, %v2330
  %v2332 = vpop.f32.mrf.mxu0
  %v2333 = vadd.f32 %v2319, %v2332
  %2334 = vdwg.mxu0
  %2335 = vmatpush.bf16.msra.mxu0 %v2154
  %2336 = vmatpush.bf16.msra.mxu0 %v2150
  %2337 = vmatpush.bf16.msra.mxu0 %v2146
  %2338 = vmatpush.bf16.msra.mxu0 %v2142
  %2339 = vmatpush.bf16.msra.mxu0 %v2138
  %2340 = vmatpush.bf16.msra.mxu0 %v2134
  %2341 = vmatpush.bf16.msra.mxu0 %v2130
  %2342 = vmatpush.bf16.msra.mxu0 %v2126
  %2343 = vmatmul.bf16.gmra.mxu0 %v1865
  %v2344 = vpop.f32.mrf.mxu0
  %v2345 = vadd.f32 0.0, %v2344
  %v2346 = vpop.f32.mrf.mxu0
  %v2347 = vadd.f32 0.0, %v2346
  %2348 = vdwg.mxu0
  %2349 = vmatpush.bf16.msra.mxu0 %v2186
  %2350 = vmatpush.bf16.msra.mxu0 %v2182
  %2351 = vmatpush.bf16.msra.mxu0 %v2178
  %2352 = vmatpush.bf16.msra.mxu0 %v2174
  %2353 = vmatpush.bf16.msra.mxu0 %v2170
  %2354 = vmatpush.bf16.msra.mxu0 %v2166
  %2355 = vmatpush.bf16.msra.mxu0 %v2162
  %2356 = vmatpush.bf16.msra.mxu0 %v2158
  %2357 = vmatmul.bf16.gmra.mxu0 %v1866
  %v2358 = vpop.f32.mrf.mxu0
  %v2359 = vadd.f32 %v2345, %v2358
  %v2360 = vpop.f32.mrf.mxu0
  %v2361 = vadd.f32 %v2347, %v2360
  %2362 = vdwg.mxu0
  %v2363 = vadd.f32 %v1777, %v2275
  %v2364 = vadd.f32 %v1805, %v2303
  %v2365 = vadd.f32 %v1833, %v2331
  %v2366 = vadd.f32 %v1861, %v2359
  %v2367 = vadd.f32 %v1779, %v2277
  %v2368 = vadd.f32 %v1807, %v2305
  %v2369 = vadd.f32 %v1835, %v2333
  %v2370 = vadd.f32 %v1863, %v2361
  %vm2371 = vcmp.ge.f32.partialorder %v2363, 0.0
  %vm2372 = vcmp.ge.f32.partialorder %v2364, 0.0
  %vm2373 = vcmp.ge.f32.partialorder %v2365, 0.0
  %vm2374 = vcmp.ge.f32.partialorder %v2366, 0.0
  %vm2375 = vcmp.ge.f32.partialorder %v2367, 0.0
  %vm2376 = vcmp.ge.f32.partialorder %v2368, 0.0
  %vm2377 = vcmp.ge.f32.partialorder %v2369, 0.0
  %vm2378 = vcmp.ge.f32.partialorder %v2370, 0.0
  %v2379 = vmul.f32 %v2363, 0.01
  %v2380 = vmul.f32 %v2364, 0.01
  %v2381 = vmul.f32 %v2365, 0.01
  %v2382 = vmul.f32 %v2366, 0.01
  %v2383 = vmul.f32 %v2367, 0.01
  %v2384 = vmul.f32 %v2368, 0.01
  %v2385 = vmul.f32 %v2369, 0.01
  %v2386 = vmul.f32 %v2370, 0.01
  %v2387 = vsel %vm2371, %v2363, %v2379
  %v2388 = vsel %vm2372, %v2364, %v2380
  %v2389 = vsel %vm2373, %v2365, %v2381
  %v2390 = vsel %vm2374, %v2366, %v2382
  %v2391 = vsel %vm2375, %v2367, %v2383
  %v2392 = vsel %vm2376, %v2368, %v2384
  %v2393 = vsel %vm2377, %v2369, %v2385
  %v2394 = vsel %vm2378, %v2370, %v2386
  %v2395 = vpack.c.bf16 %v2391, %v2387
  %v2396 = vpack.c.bf16 %v2392, %v2388
  %v2397 = vpack.c.bf16 %v2393, %v2389
  %v2398 = vpack.c.bf16 %v2394, %v2390
  %v2399 = vld [vmem:[%s12] sm:$0xff]
  %v2400 = vld [vmem:[%s12 + $0x8] sm:$0xff]
  %v2401 = vld [vmem:[%s12 + $0x10] sm:$0xff]
  %v2402 = vld [vmem:[%s12 + $0x18] sm:$0xff]
  %v2403 = vld [vmem:[%s12 + $0x20] sm:$0xff]
  %v2404 = vld [vmem:[%s12 + $0x28] sm:$0xff]
  %v2405 = vld [vmem:[%s12 + $0x30] sm:$0xff]
  %v2406 = vld [vmem:[%s12 + $0x38] sm:$0xff]
  %v2407 = vld [vmem:[%s12 + $0x40] sm:$0xff]
  %v2408 = vld [vmem:[%s12 + $0x48] sm:$0xff]
  %v2409 = vld [vmem:[%s12 + $0x50] sm:$0xff]
  %v2410 = vld [vmem:[%s12 + $0x58] sm:$0xff]
  %v2411 = vld [vmem:[%s12 + $0x60] sm:$0xff]
  %v2412 = vld [vmem:[%s12 + $0x68] sm:$0xff]
  %v2413 = vld [vmem:[%s12 + $0x70] sm:$0xff]
  %v2414 = vld [vmem:[%s12 + $0x78] sm:$0xff]
  %v2415 = vld [vmem:[%s12 + $0x80] sm:$0xff]
  %v2416 = vld [vmem:[%s12 + $0x88] sm:$0xff]
  %v2417 = vld [vmem:[%s12 + $0x90] sm:$0xff]
  %v2418 = vld [vmem:[%s12 + $0x98] sm:$0xff]
  %v2419 = vld [vmem:[%s12 + $0xa0] sm:$0xff]
  %v2420 = vld [vmem:[%s12 + $0xa8] sm:$0xff]
  %v2421 = vld [vmem:[%s12 + $0xb0] sm:$0xff]
  %v2422 = vld [vmem:[%s12 + $0xb8] sm:$0xff]
  %v2423 = vld [vmem:[%s12 + $0xc0] sm:$0xff]
  %v2424 = vld [vmem:[%s12 + $0xc8] sm:$0xff]
  %v2425 = vld [vmem:[%s12 + $0xd0] sm:$0xff]
  %v2426 = vld [vmem:[%s12 + $0xd8] sm:$0xff]
  %v2427 = vld [vmem:[%s12 + $0xe0] sm:$0xff]
  %v2428 = vld [vmem:[%s12 + $0xe8] sm:$0xff]
  %v2429 = vld [vmem:[%s12 + $0xf0] sm:$0xff]
  %v2430 = vld [vmem:[%s12 + $0xf8] sm:$0xff]
  %v2431 = vld [vmem:[%s12 + $0x100] sm:$0xff]
  %v2432 = vld [vmem:[%s12 + $0x108] sm:$0xff]
  %v2433 = vld [vmem:[%s12 + $0x110] sm:$0xff]
  %v2434 = vld [vmem:[%s12 + $0x118] sm:$0xff]
  %v2435 = vld [vmem:[%s12 + $0x120] sm:$0xff]
  %v2436 = vld [vmem:[%s12 + $0x128] sm:$0xff]
  %v2437 = vld [vmem:[%s12 + $0x130] sm:$0xff]
  %v2438 = vld [vmem:[%s12 + $0x138] sm:$0xff]
  %v2439 = vld [vmem:[%s12 + $0x140] sm:$0xff]
  %v2440 = vld [vmem:[%s12 + $0x148] sm:$0xff]
  %v2441 = vld [vmem:[%s12 + $0x150] sm:$0xff]
  %v2442 = vld [vmem:[%s12 + $0x158] sm:$0xff]
  %v2443 = vld [vmem:[%s12 + $0x160] sm:$0xff]
  %v2444 = vld [vmem:[%s12 + $0x168] sm:$0xff]
  %v2445 = vld [vmem:[%s12 + $0x170] sm:$0xff]
  %v2446 = vld [vmem:[%s12 + $0x178] sm:$0xff]
  %v2447 = vld [vmem:[%s12 + $0x180] sm:$0xff]
  %v2448 = vld [vmem:[%s12 + $0x188] sm:$0xff]
  %v2449 = vld [vmem:[%s12 + $0x190] sm:$0xff]
  %v2450 = vld [vmem:[%s12 + $0x198] sm:$0xff]
  %v2451 = vld [vmem:[%s12 + $0x1a0] sm:$0xff]
  %v2452 = vld [vmem:[%s12 + $0x1a8] sm:$0xff]
  %v2453 = vld [vmem:[%s12 + $0x1b0] sm:$0xff]
  %v2454 = vld [vmem:[%s12 + $0x1b8] sm:$0xff]
  %v2455 = vld [vmem:[%s12 + $0x1c0] sm:$0xff]
  %v2456 = vld [vmem:[%s12 + $0x1c8] sm:$0xff]
  %v2457 = vld [vmem:[%s12 + $0x1d0] sm:$0xff]
  %v2458 = vld [vmem:[%s12 + $0x1d8] sm:$0xff]
  %v2459 = vld [vmem:[%s12 + $0x1e0] sm:$0xff]
  %v2460 = vld [vmem:[%s12 + $0x1e8] sm:$0xff]
  %v2461 = vld [vmem:[%s12 + $0x1f0] sm:$0xff]
  %v2462 = vld [vmem:[%s12 + $0x1f8] sm:$0xff]
  %v2527 = vunpack.c.l.b16 %v2399
  %v2528 = vunpack.c.h.b16 %v2399
  %v2529 = vunpack.c.l.b16 %v2400
  %v2530 = vunpack.c.h.b16 %v2400
  %v2531 = vunpack.c.l.b16 %v2401
  %v2532 = vunpack.c.h.b16 %v2401
  %v2533 = vunpack.c.l.b16 %v2402
  %v2534 = vunpack.c.h.b16 %v2402
  %v2535 = vunpack.c.l.b16 %v2403
  %v2536 = vunpack.c.h.b16 %v2403
  %v2537 = vunpack.c.l.b16 %v2404
  %v2538 = vunpack.c.h.b16 %v2404
  %v2539 = vunpack.c.l.b16 %v2405
  %v2540 = vunpack.c.h.b16 %v2405
  %v2541 = vunpack.c.l.b16 %v2406
  %v2542 = vunpack.c.h.b16 %v2406
  %v2543 = vunpack.c.l.b16 %v2407
  %v2544 = vunpack.c.h.b16 %v2407
  %v2545 = vunpack.c.l.b16 %v2408
  %v2546 = vunpack.c.h.b16 %v2408
  %v2547 = vunpack.c.l.b16 %v2409
  %v2548 = vunpack.c.h.b16 %v2409
  %v2549 = vunpack.c.l.b16 %v2410
  %v2550 = vunpack.c.h.b16 %v2410
  %v2551 = vunpack.c.l.b16 %v2411
  %v2552 = vunpack.c.h.b16 %v2411
  %v2553 = vunpack.c.l.b16 %v2412
  %v2554 = vunpack.c.h.b16 %v2412
  %v2555 = vunpack.c.l.b16 %v2413
  %v2556 = vunpack.c.h.b16 %v2413
  %v2557 = vunpack.c.l.b16 %v2414
  %v2558 = vunpack.c.h.b16 %v2414
  %v2559 = vunpack.c.l.b16 %v2415
  %v2560 = vunpack.c.h.b16 %v2415
  %v2561 = vunpack.c.l.b16 %v2416
  %v2562 = vunpack.c.h.b16 %v2416
  %v2563 = vunpack.c.l.b16 %v2417
  %v2564 = vunpack.c.h.b16 %v2417
  %v2565 = vunpack.c.l.b16 %v2418
  %v2566 = vunpack.c.h.b16 %v2418
  %v2567 = vunpack.c.l.b16 %v2419
  %v2568 = vunpack.c.h.b16 %v2419
  %v2569 = vunpack.c.l.b16 %v2420
  %v2570 = vunpack.c.h.b16 %v2420
  %v2571 = vunpack.c.l.b16 %v2421
  %v2572 = vunpack.c.h.b16 %v2421
  %v2573 = vunpack.c.l.b16 %v2422
  %v2574 = vunpack.c.h.b16 %v2422
  %v2575 = vunpack.c.l.b16 %v2423
  %v2576 = vunpack.c.h.b16 %v2423
  %v2577 = vunpack.c.l.b16 %v2424
  %v2578 = vunpack.c.h.b16 %v2424
  %v2579 = vunpack.c.l.b16 %v2425
  %v2580 = vunpack.c.h.b16 %v2425
  %v2581 = vunpack.c.l.b16 %v2426
  %v2582 = vunpack.c.h.b16 %v2426
  %v2583 = vunpack.c.l.b16 %v2427
  %v2584 = vunpack.c.h.b16 %v2427
  %v2585 = vunpack.c.l.b16 %v2428
  %v2586 = vunpack.c.h.b16 %v2428
  %v2587 = vunpack.c.l.b16 %v2429
  %v2588 = vunpack.c.h.b16 %v2429
  %v2589 = vunpack.c.l.b16 %v2430
  %v2590 = vunpack.c.h.b16 %v2430
  %v2591 = vunpack.c.l.b16 %v2431
  %v2592 = vunpack.c.h.b16 %v2431
  %v2593 = vunpack.c.l.b16 %v2432
  %v2594 = vunpack.c.h.b16 %v2432
  %v2595 = vunpack.c.l.b16 %v2433
  %v2596 = vunpack.c.h.b16 %v2433
  %v2597 = vunpack.c.l.b16 %v2434
  %v2598 = vunpack.c.h.b16 %v2434
  %v2599 = vunpack.c.l.b16 %v2435
  %v2600 = vunpack.c.h.b16 %v2435
  %v2601 = vunpack.c.l.b16 %v2436
  %v2602 = vunpack.c.h.b16 %v2436
  %v2603 = vunpack.c.l.b16 %v2437
  %v2604 = vunpack.c.h.b16 %v2437
  %v2605 = vunpack.c.l.b16 %v2438
  %v2606 = vunpack.c.h.b16 %v2438
  %v2607 = vunpack.c.l.b16 %v2439
  %v2608 = vunpack.c.h.b16 %v2439
  %v2609 = vunpack.c.l.b16 %v2440
  %v2610 = vunpack.c.h.b16 %v2440
  %v2611 = vunpack.c.l.b16 %v2441
  %v2612 = vunpack.c.h.b16 %v2441
  %v2613 = vunpack.c.l.b16 %v2442
  %v2614 = vunpack.c.h.b16 %v2442
  %v2615 = vunpack.c.l.b16 %v2443
  %v2616 = vunpack.c.h.b16 %v2443
  %v2617 = vunpack.c.l.b16 %v2444
  %v2618 = vunpack.c.h.b16 %v2444
  %v2619 = vunpack.c.l.b16 %v2445
  %v2620 = vunpack.c.h.b16 %v2445
  %v2621 = vunpack.c.l.b16 %v2446
  %v2622 = vunpack.c.h.b16 %v2446
  %v2623 = vunpack.c.l.b16 %v2447
  %v2624 = vunpack.c.h.b16 %v2447
  %v2625 = vunpack.c.l.b16 %v2448
  %v2626 = vunpack.c.h.b16 %v2448
  %v2627 = vunpack.c.l.b16 %v2449
  %v2628 = vunpack.c.h.b16 %v2449
  %v2629 = vunpack.c.l.b16 %v2450
  %v2630 = vunpack.c.h.b16 %v2450
  %v2631 = vunpack.c.l.b16 %v2451
  %v2632 = vunpack.c.h.b16 %v2451
  %v2633 = vunpack.c.l.b16 %v2452
  %v2634 = vunpack.c.h.b16 %v2452
  %v2635 = vunpack.c.l.b16 %v2453
  %v2636 = vunpack.c.h.b16 %v2453
  %v2637 = vunpack.c.l.b16 %v2454
  %v2638 = vunpack.c.h.b16 %v2454
  %v2639 = vunpack.c.l.b16 %v2455
  %v2640 = vunpack.c.h.b16 %v2455
  %v2641 = vunpack.c.l.b16 %v2456
  %v2642 = vunpack.c.h.b16 %v2456
  %v2643 = vunpack.c.l.b16 %v2457
  %v2644 = vunpack.c.h.b16 %v2457
  %v2645 = vunpack.c.l.b16 %v2458
  %v2646 = vunpack.c.h.b16 %v2458
  %v2647 = vunpack.c.l.b16 %v2459
  %v2648 = vunpack.c.h.b16 %v2459
  %v2649 = vunpack.c.l.b16 %v2460
  %v2650 = vunpack.c.h.b16 %v2460
  %v2651 = vunpack.c.l.b16 %v2461
  %v2652 = vunpack.c.h.b16 %v2461
  %v2653 = vunpack.c.l.b16 %v2462
  %v2654 = vunpack.c.h.b16 %v2462
  %v2655 = vpack.c.b16 %v2529, %v2527
  %v2656 = vpack.c.b16 %v2530, %v2528
  %v2657 = vpack.c.b16 %v2533, %v2531
  %v2658 = vpack.c.b16 %v2534, %v2532
  %v2659 = vpack.c.b16 %v2537, %v2535
  %v2660 = vpack.c.b16 %v2538, %v2536
  %v2661 = vpack.c.b16 %v2541, %v2539
  %v2662 = vpack.c.b16 %v2542, %v2540
  %v2663 = vpack.c.b16 %v2545, %v2543
  %v2664 = vpack.c.b16 %v2546, %v2544
  %v2665 = vpack.c.b16 %v2549, %v2547
  %v2666 = vpack.c.b16 %v2550, %v2548
  %v2667 = vpack.c.b16 %v2553, %v2551
  %v2668 = vpack.c.b16 %v2554, %v2552
  %v2669 = vpack.c.b16 %v2557, %v2555
  %v2670 = vpack.c.b16 %v2558, %v2556
  %v2671 = vpack.c.b16 %v2561, %v2559
  %v2672 = vpack.c.b16 %v2562, %v2560
  %v2673 = vpack.c.b16 %v2565, %v2563
  %v2674 = vpack.c.b16 %v2566, %v2564
  %v2675 = vpack.c.b16 %v2569, %v2567
  %v2676 = vpack.c.b16 %v2570, %v2568
  %v2677 = vpack.c.b16 %v2573, %v2571
  %v2678 = vpack.c.b16 %v2574, %v2572
  %v2679 = vpack.c.b16 %v2577, %v2575
  %v2680 = vpack.c.b16 %v2578, %v2576
  %v2681 = vpack.c.b16 %v2581, %v2579
  %v2682 = vpack.c.b16 %v2582, %v2580
  %v2683 = vpack.c.b16 %v2585, %v2583
  %v2684 = vpack.c.b16 %v2586, %v2584
  %v2685 = vpack.c.b16 %v2589, %v2587
  %v2686 = vpack.c.b16 %v2590, %v2588
  %v2687 = vpack.c.b16 %v2593, %v2591
  %v2688 = vpack.c.b16 %v2594, %v2592
  %v2689 = vpack.c.b16 %v2597, %v2595
  %v2690 = vpack.c.b16 %v2598, %v2596
  %v2691 = vpack.c.b16 %v2601, %v2599
  %v2692 = vpack.c.b16 %v2602, %v2600
  %v2693 = vpack.c.b16 %v2605, %v2603
  %v2694 = vpack.c.b16 %v2606, %v2604
  %v2695 = vpack.c.b16 %v2609, %v2607
  %v2696 = vpack.c.b16 %v2610, %v2608
  %v2697 = vpack.c.b16 %v2613, %v2611
  %v2698 = vpack.c.b16 %v2614, %v2612
  %v2699 = vpack.c.b16 %v2617, %v2615
  %v2700 = vpack.c.b16 %v2618, %v2616
  %v2701 = vpack.c.b16 %v2621, %v2619
  %v2702 = vpack.c.b16 %v2622, %v2620
  %v2703 = vpack.c.b16 %v2625, %v2623
  %v2704 = vpack.c.b16 %v2626, %v2624
  %v2705 = vpack.c.b16 %v2629, %v2627
  %v2706 = vpack.c.b16 %v2630, %v2628
  %v2707 = vpack.c.b16 %v2633, %v2631
  %v2708 = vpack.c.b16 %v2634, %v2632
  %v2709 = vpack.c.b16 %v2637, %v2635
  %v2710 = vpack.c.b16 %v2638, %v2636
  %v2711 = vpack.c.b16 %v2641, %v2639
  %v2712 = vpack.c.b16 %v2642, %v2640
  %v2713 = vpack.c.b16 %v2645, %v2643
  %v2714 = vpack.c.b16 %v2646, %v2644
  %v2715 = vpack.c.b16 %v2649, %v2647
  %v2716 = vpack.c.b16 %v2650, %v2648
  %v2717 = vpack.c.b16 %v2653, %v2651
  %v2718 = vpack.c.b16 %v2654, %v2652
  %2783 = vmatpush.bf16.msra.mxu0 %v2669
  %2784 = vmatpush.bf16.msra.mxu0 %v2667
  %2785 = vmatpush.bf16.msra.mxu0 %v2665
  %2786 = vmatpush.bf16.msra.mxu0 %v2663
  %2787 = vmatpush.bf16.msra.mxu0 %v2661
  %2788 = vmatpush.bf16.msra.mxu0 %v2659
  %2789 = vmatpush.bf16.msra.mxu0 %v2657
  %2790 = vmatpush.bf16.msra.mxu0 %v2655
  %2791 = vmatmul.bf16.gmra.mxu0 %v2395
  %v2792 = vpop.f32.mrf.mxu0
  %v2793 = vadd.f32 0.0, %v2792
  %v2794 = vpop.f32.mrf.mxu0
  %v2795 = vadd.f32 0.0, %v2794
  %2796 = vdwg.mxu0
  %2797 = vmatpush.bf16.msra.mxu0 %v2685
  %2798 = vmatpush.bf16.msra.mxu0 %v2683
  %2799 = vmatpush.bf16.msra.mxu0 %v2681
  %2800 = vmatpush.bf16.msra.mxu0 %v2679
  %2801 = vmatpush.bf16.msra.mxu0 %v2677
  %2802 = vmatpush.bf16.msra.mxu0 %v2675
  %2803 = vmatpush.bf16.msra.mxu0 %v2673
  %2804 = vmatpush.bf16.msra.mxu0 %v2671
  %2805 = vmatmul.bf16.gmra.mxu0 %v2396
  %v2806 = vpop.f32.mrf.mxu0
  %v2807 = vadd.f32 %v2793, %v2806
  %v2808 = vpop.f32.mrf.mxu0
  %v2809 = vadd.f32 %v2795, %v2808
  %2810 = vdwg.mxu0
  %2811 = vmatpush.bf16.msra.mxu0 %v2701
  %2812 = vmatpush.bf16.msra.mxu0 %v2699
  %2813 = vmatpush.bf16.msra.mxu0 %v2697
  %2814 = vmatpush.bf16.msra.mxu0 %v2695
  %2815 = vmatpush.bf16.msra.mxu0 %v2693
  %2816 = vmatpush.bf16.msra.mxu0 %v2691
  %2817 = vmatpush.bf16.msra.mxu0 %v2689
  %2818 = vmatpush.bf16.msra.mxu0 %v2687
  %2819 = vmatmul.bf16.gmra.mxu0 %v2397
  %v2820 = vpop.f32.mrf.mxu0
  %v2821 = vadd.f32 %v2807, %v2820
  %v2822 = vpop.f32.mrf.mxu0
  %v2823 = vadd.f32 %v2809, %v2822
  %2824 = vdwg.mxu0
  %2825 = vmatpush.bf16.msra.mxu0 %v2717
  %2826 = vmatpush.bf16.msra.mxu0 %v2715
  %2827 = vmatpush.bf16.msra.mxu0 %v2713
  %2828 = vmatpush.bf16.msra.mxu0 %v2711
  %2829 = vmatpush.bf16.msra.mxu0 %v2709
  %2830 = vmatpush.bf16.msra.mxu0 %v2707
  %2831 = vmatpush.bf16.msra.mxu0 %v2705
  %2832 = vmatpush.bf16.msra.mxu0 %v2703
  %2833 = vmatmul.bf16.gmra.mxu0 %v2398
  %v2834 = vpop.f32.mrf.mxu0
  %v2835 = vadd.f32 %v2821, %v2834
  %v2836 = vpop.f32.mrf.mxu0
  %v2837 = vadd.f32 %v2823, %v2836
  %2838 = vdwg.mxu0
  %2839 = vmatpush.bf16.msra.mxu0 %v2670
  %2840 = vmatpush.bf16.msra.mxu0 %v2668
  %2841 = vmatpush.bf16.msra.mxu0 %v2666
  %2842 = vmatpush.bf16.msra.mxu0 %v2664
  %2843 = vmatpush.bf16.msra.mxu0 %v2662
  %2844 = vmatpush.bf16.msra.mxu0 %v2660
  %2845 = vmatpush.bf16.msra.mxu0 %v2658
  %2846 = vmatpush.bf16.msra.mxu0 %v2656
  %2847 = vmatmul.bf16.gmra.mxu0 %v2395
  %v2848 = vpop.f32.mrf.mxu0
  %v2849 = vadd.f32 0.0, %v2848
  %v2850 = vpop.f32.mrf.mxu0
  %v2851 = vadd.f32 0.0, %v2850
  %2852 = vdwg.mxu0
  %2853 = vmatpush.bf16.msra.mxu0 %v2686
  %2854 = vmatpush.bf16.msra.mxu0 %v2684
  %2855 = vmatpush.bf16.msra.mxu0 %v2682
  %2856 = vmatpush.bf16.msra.mxu0 %v2680
  %2857 = vmatpush.bf16.msra.mxu0 %v2678
  %2858 = vmatpush.bf16.msra.mxu0 %v2676
  %2859 = vmatpush.bf16.msra.mxu0 %v2674
  %2860 = vmatpush.bf16.msra.mxu0 %v2672
  %2861 = vmatmul.bf16.gmra.mxu0 %v2396
  %v2862 = vpop.f32.mrf.mxu0
  %v2863 = vadd.f32 %v2849, %v2862
  %v2864 = vpop.f32.mrf.mxu0
  %v2865 = vadd.f32 %v2851, %v2864
  %2866 = vdwg.mxu0
  %2867 = vmatpush.bf16.msra.mxu0 %v2702
  %2868 = vmatpush.bf16.msra.mxu0 %v2700
  %2869 = vmatpush.bf16.msra.mxu0 %v2698
  %2870 = vmatpush.bf16.msra.mxu0 %v2696
  %2871 = vmatpush.bf16.msra.mxu0 %v2694
  %2872 = vmatpush.bf16.msra.mxu0 %v2692
  %2873 = vmatpush.bf16.msra.mxu0 %v2690
  %2874 = vmatpush.bf16.msra.mxu0 %v2688
  %2875 = vmatmul.bf16.gmra.mxu0 %v2397
  %v2876 = vpop.f32.mrf.mxu0
  %v2877 = vadd.f32 %v2863, %v2876
  %v2878 = vpop.f32.mrf.mxu0
  %v2879 = vadd.f32 %v2865, %v2878
  %2880 = vdwg.mxu0
  %2881 = vmatpush.bf16.msra.mxu0 %v2718
  %2882 = vmatpush.bf16.msra.mxu0 %v2716
  %2883 = vmatpush.bf16.msra.mxu0 %v2714
  %2884 = vmatpush.bf16.msra.mxu0 %v2712
  %2885 = vmatpush.bf16.msra.mxu0 %v2710
  %2886 = vmatpush.bf16.msra.mxu0 %v2708
  %2887 = vmatpush.bf16.msra.mxu0 %v2706
  %2888 = vmatpush.bf16.msra.mxu0 %v2704
  %2889 = vmatmul.bf16.gmra.mxu0 %v2398
  %v2890 = vpop.f32.mrf.mxu0
  %v2891 = vadd.f32 %v2877, %v2890
  %v2892 = vpop.f32.mrf.mxu0
  %v2893 = vadd.f32 %v2879, %v2892
  %2894 = vdwg.mxu0
  %vm2895 = vcmp.ge.f32.partialorder %v2835, 0.0
  %vm2896 = vcmp.ge.f32.partialorder %v2891, 0.0
  %vm2897 = vcmp.ge.f32.partialorder %v2837, 0.0
  %vm2898 = vcmp.ge.f32.partialorder %v2893, 0.0
  %v2899 = vmul.f32 %v2835, 0.01
  %v2900 = vmul.f32 %v2891, 0.01
  %v2901 = vmul.f32 %v2837, 0.01
  %v2902 = vmul.f32 %v2893, 0.01
  %v2903 = vsel %vm2895, %v2835, %v2899
  %v2904 = vsel %vm2896, %v2891, %v2900
  %v2905 = vsel %vm2897, %v2837, %v2901
  %v2906 = vsel %vm2898, %v2893, %v2902
  %v2907 = vpack.c.bf16 %v2905, %v2903
  %v2908 = vpack.c.bf16 %v2906, %v2904
  %v2909 = vld [vmem:[%s13] sm:$0xff]
  %v2910 = vld [vmem:[%s13 + $0x8] sm:$0xff]
  %v2911 = vld [vmem:[%s13 + $0x10] sm:$0xff]
  %v2912 = vld [vmem:[%s13 + $0x18] sm:$0xff]
  %v2913 = vld [vmem:[%s13 + $0x20] sm:$0xff]
  %v2914 = vld [vmem:[%s13 + $0x28] sm:$0xff]
  %v2915 = vld [vmem:[%s13 + $0x30] sm:$0xff]
  %v2916 = vld [vmem:[%s13 + $0x38] sm:$0xff]
  %v2917 = vld [vmem:[%s13 + $0x40] sm:$0xff]
  %v2918 = vld [vmem:[%s13 + $0x48] sm:$0xff]
  %v2919 = vld [vmem:[%s13 + $0x50] sm:$0xff]
  %v2920 = vld [vmem:[%s13 + $0x58] sm:$0xff]
  %v2921 = vld [vmem:[%s13 + $0x60] sm:$0xff]
  %v2922 = vld [vmem:[%s13 + $0x68] sm:$0xff]
  %v2923 = vld [vmem:[%s13 + $0x70] sm:$0xff]
  %v2924 = vld [vmem:[%s13 + $0x78] sm:$0xff]
  %v2925 = vld [vmem:[%s13 + $0x80] sm:$0xff]
  %v2926 = vld [vmem:[%s13 + $0x88] sm:$0xff]
  %v2927 = vld [vmem:[%s13 + $0x90] sm:$0xff]
  %v2928 = vld [vmem:[%s13 + $0x98] sm:$0xff]
  %v2929 = vld [vmem:[%s13 + $0xa0] sm:$0xff]
  %v2930 = vld [vmem:[%s13 + $0xa8] sm:$0xff]
  %v2931 = vld [vmem:[%s13 + $0xb0] sm:$0xff]
  %v2932 = vld [vmem:[%s13 + $0xb8] sm:$0xff]
  %v2933 = vld [vmem:[%s13 + $0xc0] sm:$0xff]
  %v2934 = vld [vmem:[%s13 + $0xc8] sm:$0xff]
  %v2935 = vld [vmem:[%s13 + $0xd0] sm:$0xff]
  %v2936 = vld [vmem:[%s13 + $0xd8] sm:$0xff]
  %v2937 = vld [vmem:[%s13 + $0xe0] sm:$0xff]
  %v2938 = vld [vmem:[%s13 + $0xe8] sm:$0xff]
  %v2939 = vld [vmem:[%s13 + $0xf0] sm:$0xff]
  %v2940 = vld [vmem:[%s13 + $0xf8] sm:$0xff]
  %v2973 = vunpack.c.l.b16 %v2909
  %v2974 = vunpack.c.h.b16 %v2909
  %v2975 = vunpack.c.l.b16 %v2910
  %v2976 = vunpack.c.h.b16 %v2910
  %v2977 = vunpack.c.l.b16 %v2911
  %v2978 = vunpack.c.h.b16 %v2911
  %v2979 = vunpack.c.l.b16 %v2912
  %v2980 = vunpack.c.h.b16 %v2912
  %v2981 = vunpack.c.l.b16 %v2913
  %v2982 = vunpack.c.h.b16 %v2913
  %v2983 = vunpack.c.l.b16 %v2914
  %v2984 = vunpack.c.h.b16 %v2914
  %v2985 = vunpack.c.l.b16 %v2915
  %v2986 = vunpack.c.h.b16 %v2915
  %v2987 = vunpack.c.l.b16 %v2916
  %v2988 = vunpack.c.h.b16 %v2916
  %v2989 = vunpack.c.l.b16 %v2917
  %v2990 = vunpack.c.h.b16 %v2917
  %v2991 = vunpack.c.l.b16 %v2918
  %v2992 = vunpack.c.h.b16 %v2918
  %v2993 = vunpack.c.l.b16 %v2919
  %v2994 = vunpack.c.h.b16 %v2919
  %v2995 = vunpack.c.l.b16 %v2920
  %v2996 = vunpack.c.h.b16 %v2920
  %v2997 = vunpack.c.l.b16 %v2921
  %v2998 = vunpack.c.h.b16 %v2921
  %v2999 = vunpack.c.l.b16 %v2922
  %v3000 = vunpack.c.h.b16 %v2922
  %v3001 = vunpack.c.l.b16 %v2923
  %v3002 = vunpack.c.h.b16 %v2923
  %v3003 = vunpack.c.l.b16 %v2924
  %v3004 = vunpack.c.h.b16 %v2924
  %v3005 = vunpack.c.l.b16 %v2925
  %v3006 = vunpack.c.h.b16 %v2925
  %v3007 = vunpack.c.l.b16 %v2926
  %v3008 = vunpack.c.h.b16 %v2926
  %v3009 = vunpack.c.l.b16 %v2927
  %v3010 = vunpack.c.h.b16 %v2927
  %v3011 = vunpack.c.l.b16 %v2928
  %v3012 = vunpack.c.h.b16 %v2928
  %v3013 = vunpack.c.l.b16 %v2929
  %v3014 = vunpack.c.h.b16 %v2929
  %v3015 = vunpack.c.l.b16 %v2930
  %v3016 = vunpack.c.h.b16 %v2930
  %v3017 = vunpack.c.l.b16 %v2931
  %v3018 = vunpack.c.h.b16 %v2931
  %v3019 = vunpack.c.l.b16 %v2932
  %v3020 = vunpack.c.h.b16 %v2932
  %v3021 = vunpack.c.l.b16 %v2933
  %v3022 = vunpack.c.h.b16 %v2933
  %v3023 = vunpack.c.l.b16 %v2934
  %v3024 = vunpack.c.h.b16 %v2934
  %v3025 = vunpack.c.l.b16 %v2935
  %v3026 = vunpack.c.h.b16 %v2935
  %v3027 = vunpack.c.l.b16 %v2936
  %v3028 = vunpack.c.h.b16 %v2936
  %v3029 = vunpack.c.l.b16 %v2937
  %v3030 = vunpack.c.h.b16 %v2937
  %v3031 = vunpack.c.l.b16 %v2938
  %v3032 = vunpack.c.h.b16 %v2938
  %v3033 = vunpack.c.l.b16 %v2939
  %v3034 = vunpack.c.h.b16 %v2939
  %v3035 = vunpack.c.l.b16 %v2940
  %v3036 = vunpack.c.h.b16 %v2940
  %v3037 = vpack.c.b16 %v2975, %v2973
  %v3038 = vpack.c.b16 %v2976, %v2974
  %v3039 = vpack.c.b16 %v2979, %v2977
  %v3040 = vpack.c.b16 %v2980, %v2978
  %v3041 = vpack.c.b16 %v2983, %v2981
  %v3042 = vpack.c.b16 %v2984, %v2982
  %v3043 = vpack.c.b16 %v2987, %v2985
  %v3044 = vpack.c.b16 %v2988, %v2986
  %v3045 = vpack.c.b16 %v2991, %v2989
  %v3046 = vpack.c.b16 %v2992, %v2990
  %v3047 = vpack.c.b16 %v2995, %v2993
  %v3048 = vpack.c.b16 %v2996, %v2994
  %v3049 = vpack.c.b16 %v2999, %v2997
  %v3050 = vpack.c.b16 %v3000, %v2998
  %v3051 = vpack.c.b16 %v3003, %v3001
  %v3052 = vpack.c.b16 %v3004, %v3002
  %v3053 = vpack.c.b16 %v3007, %v3005
  %v3054 = vpack.c.b16 %v3008, %v3006
  %v3055 = vpack.c.b16 %v3011, %v3009
  %v3056 = vpack.c.b16 %v3012, %v3010
  %v3057 = vpack.c.b16 %v3015, %v3013
  %v3058 = vpack.c.b16 %v3016, %v3014
  %v3059 = vpack.c.b16 %v3019, %v3017
  %v3060 = vpack.c.b16 %v3020, %v3018
  %v3061 = vpack.c.b16 %v3023, %v3021
  %v3062 = vpack.c.b16 %v3024, %v3022
  %v3063 = vpack.c.b16 %v3027, %v3025
  %v3064 = vpack.c.b16 %v3028, %v3026
  %v3065 = vpack.c.b16 %v3031, %v3029
  %v3066 = vpack.c.b16 %v3032, %v3030
  %v3067 = vpack.c.b16 %v3035, %v3033
  %v3068 = vpack.c.b16 %v3036, %v3034
  %3101 = vmatpush.bf16.msra.mxu0 %v3051
  %3102 = vmatpush.bf16.msra.mxu0 %v3049
  %3103 = vmatpush.bf16.msra.mxu0 %v3047
  %3104 = vmatpush.bf16.msra.mxu0 %v3045
  %3105 = vmatpush.bf16.msra.mxu0 %v3043
  %3106 = vmatpush.bf16.msra.mxu0 %v3041
  %3107 = vmatpush.bf16.msra.mxu0 %v3039
  %3108 = vmatpush.bf16.msra.mxu0 %v3037
  %3109 = vmatmul.bf16.gmra.mxu0 %v2907
  %v3110 = vpop.f32.mrf.mxu0
  %v3111 = vadd.f32 0.0, %v3110
  %v3112 = vpop.f32.mrf.mxu0
  %v3113 = vadd.f32 0.0, %v3112
  %3114 = vdwg.mxu0
  %3115 = vmatpush.bf16.msra.mxu0 %v3067
  %3116 = vmatpush.bf16.msra.mxu0 %v3065
  %3117 = vmatpush.bf16.msra.mxu0 %v3063
  %3118 = vmatpush.bf16.msra.mxu0 %v3061
  %3119 = vmatpush.bf16.msra.mxu0 %v3059
  %3120 = vmatpush.bf16.msra.mxu0 %v3057
  %3121 = vmatpush.bf16.msra.mxu0 %v3055
  %3122 = vmatpush.bf16.msra.mxu0 %v3053
  %3123 = vmatmul.bf16.gmra.mxu0 %v2908
  %v3124 = vpop.f32.mrf.mxu0
  %v3125 = vadd.f32 %v3111, %v3124
  %v3126 = vpop.f32.mrf.mxu0
  %v3127 = vadd.f32 %v3113, %v3126
  %3128 = vdwg.mxu0
  %3129 = vmatpush.bf16.msra.mxu0 %v3052
  %3130 = vmatpush.bf16.msra.mxu0 %v3050
  %3131 = vmatpush.bf16.msra.mxu0 %v3048
  %3132 = vmatpush.bf16.msra.mxu0 %v3046
  %3133 = vmatpush.bf16.msra.mxu0 %v3044
  %3134 = vmatpush.bf16.msra.mxu0 %v3042
  %3135 = vmatpush.bf16.msra.mxu0 %v3040
  %3136 = vmatpush.bf16.msra.mxu0 %v3038
  %3137 = vmatmul.bf16.gmra.mxu0 %v2907
  %v3138 = vpop.f32.mrf.mxu0
  %v3139 = vadd.f32 0.0, %v3138
  %v3140 = vpop.f32.mrf.mxu0
  %v3141 = vadd.f32 0.0, %v3140
  %3142 = vdwg.mxu0
  %3143 = vmatpush.bf16.msra.mxu0 %v3068
  %3144 = vmatpush.bf16.msra.mxu0 %v3066
  %3145 = vmatpush.bf16.msra.mxu0 %v3064
  %3146 = vmatpush.bf16.msra.mxu0 %v3062
  %3147 = vmatpush.bf16.msra.mxu0 %v3060
  %3148 = vmatpush.bf16.msra.mxu0 %v3058
  %3149 = vmatpush.bf16.msra.mxu0 %v3056
  %3150 = vmatpush.bf16.msra.mxu0 %v3054
  %3151 = vmatmul.bf16.gmra.mxu0 %v2908
  %v3152 = vpop.f32.mrf.mxu0
  %v3153 = vadd.f32 %v3139, %v3152
  %v3154 = vpop.f32.mrf.mxu0
  %v3155 = vadd.f32 %v3141, %v3154
  %3156 = vdwg.mxu0
  %3157 = vst [vmem:[%s14] sm:$0xff] %v3125
  %3158 = vst [vmem:[%s14 + $0x8] sm:$0xff] %v3153
  %3159 = vst [vmem:[%s14 + $0x10] sm:$0xff] %v3127
  %3160 = vst [vmem:[%s14 + $0x18] sm:$0xff] %v3155
  // Predicated region
  $region58: #{diffusion_net_forward.1} parent=0 // pred_check
    _
  $region59: #{diffusion_net_forward.1} parent=0 // pred_check_branch
    %3162 = sbr.rel (0) target = $region61
  $region60: #{diffusion_net_forward.1} parent=0 // pred_region
    _
  $region61: #{diffusion_net_forward.1} parent=0 // pred_fallthru
    _
  // Predicated region
  $region62: #{diffusion_net_forward.1} parent=0 // pred_check
    _
  $region63: #{diffusion_net_forward.1} parent=0 // pred_check_branch
    %3164 = sbr.rel (0) target = $region65
  $region64: #{diffusion_net_forward.1} parent=0 // pred_region
    _
  $region65: #{diffusion_net_forward.1} parent=0 // pred_fallthru
    _

</llo_original>
